<compile_context>
chip_gen: v5e
topology: v5e:2x2
jax: 0.10.0
libtpu: 0.0.40
codegen_flags: <defaults>
</compile_context>

<pallas_src>
import functools

import numpy as np
import jax
import jax.numpy as jnp
from jax import lax
from jax.experimental import pallas as pl
from jax.experimental.pallas import tpu as pltpu


def _cc_kernel(x_ref, out_ref, *, img_w, n_cand_pad):
    """Fused connected-components convergence loop.

    Layout: images packed side-by-side along lanes, slab shape = (H, n_img*W).
    """
    x = x_ref[...]                          # (h, tw) float32, 0/1 foreground
    h, tw = x.shape
    neg_inf = jnp.float32(-jnp.inf)

    # ---------- loop-invariant index maps & masks (hoisted) ----------
    row = lax.broadcasted_iota(jnp.int32, (h, tw), 0)
    col = lax.broadcasted_iota(jnp.int32, (h, tw), 1)
    lcol = col % img_w                      # column inside each packed image
    row_f = row.astype(jnp.float32)
    lcol_f = lcol.astype(jnp.float32)

    def ok_roll(idx_f, shift, axis):
        # Accept a rolled value only if its source index differs by exactly 1.
        # Rejects wrap-around and cross-image leakage regardless of the
        # hardware roll direction convention.
        d = pltpu.roll(idx_f, shift=shift, axis=axis) - idx_f
        return (d == 1.0) | (d == -1.0)

    ok_vd = ok_roll(row_f, 1, 0)            # vertical neighbours (sublanes)
    ok_vu = ok_roll(row_f, h - 1, 0)
    ok_hr = ok_roll(lcol_f, 1, 1)           # horizontal neighbours (lanes)
    ok_hl = ok_roll(lcol_f, tw - 1, 1)
    is_fg = x == 1.0

    # Initial mask = x * (H*W - flat_pixel_index), identical per image.
    mult = jnp.float32(h * img_w)
    weight = mult - (row_f * jnp.float32(img_w) + lcol_f)
    mask0 = x * weight

    # Candidate matrix for the vectorized unique count:
    # candidates (0..H*W, padded to a multiple of 8) vary along sublanes,
    # the 128-pixel row chunk varies along lanes.  Loop-invariant.
    cand = lax.broadcasted_iota(jnp.int32, (n_cand_pad, tw), 0).astype(jnp.float32)

    # TODO(synk): the unique count assumes label values are exact small
    # integers (binary x); a general torch.unique on arbitrary floats would
    # need a sort-based count with no clean in-kernel equivalent.
    def unique_count(m):
        acc = jnp.zeros((n_cand_pad, tw), jnp.float32)
        for r in range(h):                  # static unroll over row chunks
            chunk = jnp.broadcast_to(m[r:r + 1, :], (n_cand_pad, tw))
            acc = jnp.where(cand == chunk, 1.0, acc)
        pres = jnp.max(acc, axis=1, keepdims=True)      # (n_cand_pad, 1)
        return jnp.sum(pres).astype(jnp.int32)

    def pool3x3(m):
        # Separable 3x3/stride-1/pad(-inf) max pool via lane/sublane rolls.
        vd = jnp.where(ok_vd, pltpu.roll(m, shift=1, axis=0), neg_inf)
        vu = jnp.where(ok_vu, pltpu.roll(m, shift=h - 1, axis=0), neg_inf)
        vmax = jnp.maximum(m, jnp.maximum(vd, vu))
        hr = jnp.where(ok_hr, pltpu.roll(vmax, shift=1, axis=1), neg_inf)
        hl = jnp.where(ok_hl, pltpu.roll(vmax, shift=tw - 1, axis=1), neg_inf)
        return jnp.maximum(vmax, jnp.maximum(hr, hl))

    def cond(carry):
        _m, last_len, cur_len = carry
        return cur_len != last_len

    def body(carry):
        m, _last_len, cur_len = carry
        new_m = jnp.where(is_fg, pool3x3(m), m)
        return new_m, cur_len, unique_count(new_m)

    m_final, _, _ = lax.while_loop(
        cond, body, (mask0, jnp.int32(0), jnp.int32(-1)))
    out_ref[...] = m_final


def _cc_pallas(x2d, img_w):
    h, tw = x2d.shape
    n_vals = h * img_w + 1                       # possible mask values 0..H*W
    n_cand_pad = ((n_vals + 7) // 8) * 8
    kernel = functools.partial(_cc_kernel, img_w=img_w, n_cand_pad=n_cand_pad)
    # Small problem: whole slab lives in VMEM, no grid needed.
    # TODO(synk): for large B*C / H*W, add a grid over the image axis with
    # dimension_semantics=("parallel",) and size blocks for v7x's 64 MiB VMEM.
    return pl.pallas_call(
        kernel,
        out_shape=jax.ShapeDtypeStruct((h, tw), jnp.float32),
        in_specs=[pl.BlockSpec(memory_space=pltpu.MemorySpace.VMEM)],
        out_specs=pl.BlockSpec(memory_space=pltpu.MemorySpace.VMEM),
    )(x2d)


@jax.jit
def connected_components(x):
    if x.ndim == 3:
        b, h, w = x.shape
        n = b
    elif x.ndim == 4:
        b, c, h, w = x.shape
        n = b * c
    else:
        raise ValueError("expected 3-D or 4-D input")

    xf = x.astype(jnp.float32).reshape(n, h, w)
    # Pack images side-by-side along the lane axis: (H, n*W).
    x2d = jnp.transpose(xf, (1, 0, 2)).reshape(h, n * w)
    m2d = _cc_pallas(x2d, w)
    mask = jnp.transpose(m2d.reshape(h, n, w), (1, 0, 2))
    return mask.reshape(x.shape)


def _reference_numpy(x):
    """Direct numpy transcription of the PyTorch forward (for verification)."""
    if x.ndim == 3:
        h, w = x.shape[1], x.shape[2]
    else:
        h, w = x.shape[2], x.shape[3]
    mult = h * w
    wts = (mult - np.arange(mult)).reshape(h, w)
    mask = (x * wts).astype(np.float32)

    def pool(m):
        pad = np.full(m.shape[:-2] + (h + 2, w + 2), -np.inf, np.float32)
        pad[..., 1:h + 1, 1:w + 1] = m
        out = np.full_like(m, -np.inf)
        for dy in range(3):
            for dx in range(3):
                out = np.maximum(out, pad[..., dy:dy + h, dx:dx + w])
        return out

    last_len, cur_len = 0, -1
    while cur_len != last_len:
        p = pool(mask)
        mask = np.where(x == 1, p, mask)
        last_len = cur_len
        cur_len = np.unique(mask).shape[0]
    return mask


if __name__ == "__main__":
    key = jax.random.PRNGKey(0)
    B, C, H, W = 2, 4, 16, 16
    # Binary foreground mask, the module's intended input.
    x = (jax.random.uniform(key, (B, C, H, W)) > 0.6).astype(jnp.float32)

    out = connected_components(x)
    out = jax.block_until_ready(out)

    ref = _reference_numpy(np.asarray(x))
    np.testing.assert_array_equal(np.asarray(out), ref)
    print("KERNEL_OK")
</pallas_src>

<mosaic_0001>
module attributes {stable_mosaic.version = 11 : i64} {
  func.func @_cc_kernel(%arg0: memref<16x128xf32, #tpu.memory_space<vmem>>, %arg1: memref<16x128xf32, #tpu.memory_space<vmem>>) attributes {dimension_semantics = [], scalar_prefetch = 0 : i64, scratch_operands = 0 : i64, tpu.core_type = #tpu.core_type<tc>} {
    %c0 = arith.constant 0 : index
    %c0_0 = arith.constant 0 : index
    %0 = vector.load %arg0[%c0, %c0_0] : memref<16x128xf32, #tpu.memory_space<vmem>>, vector<16x128xf32>
    %1 = tpu.iota {dimensions = array<i32: 0>} : vector<16x128xi32>
    %2 = tpu.iota {dimensions = array<i32: 1>} : vector<16x128xi32>
    %c16_i32 = arith.constant 16 : i32
    %c0_i32 = arith.constant 0 : i32
    %3 = arith.cmpi eq, %c16_i32, %c0_i32 : i32
    %c1_i32 = arith.constant 1 : i32
    %4 = arith.select %3, %c1_i32, %c16_i32 : i32
    %5 = vector.broadcast %4 : i32 to vector<16x128xi32>
    %6 = arith.remsi %2, %5 : vector<16x128xi32>
    %c0_i32_1 = arith.constant 0 : i32
    %7 = vector.broadcast %c0_i32_1 : i32 to vector<16x128xi32>
    %8 = arith.cmpi ne, %6, %7 : vector<16x128xi32>
    %c0_i32_2 = arith.constant 0 : i32
    %9 = vector.broadcast %c0_i32_2 : i32 to vector<16x128xi32>
    %10 = arith.cmpi slt, %6, %9 : vector<16x128xi32>
    %c0_i32_3 = arith.constant 0 : i32
    %11 = arith.cmpi slt, %4, %c0_i32_3 : i32
    %12 = vector.broadcast %11 : i1 to vector<16x128xi1>
    %13 = vector.broadcast %12 : vector<16x128xi1> to vector<16x128xi1>
    %14 = arith.xori %10, %13 : vector<16x128xi1>
    %15 = arith.andi %14, %8 : vector<16x128xi1>
    %16 = vector.broadcast %4 : i32 to vector<16x128xi32>
    %17 = arith.addi %6, %16 : vector<16x128xi32>
    %18 = arith.select %15, %17, %6 : vector<16x128xi1>, vector<16x128xi32>
    %19 = arith.sitofp %1 : vector<16x128xi32> to vector<16x128xf32>
    %20 = arith.sitofp %18 : vector<16x128xi32> to vector<16x128xf32>
    %c1_i32_4 = arith.constant 1 : i32
    %21 = tpu.dynamic_rotate %19 by %c1_i32_4 dim 0 : vector<16x128xf32>, i32 -> vector<16x128xf32>
    %22 = arith.subf %21, %19 : vector<16x128xf32>
    %cst = arith.constant 1.000000e+00 : f32
    %23 = vector.broadcast %cst : f32 to vector<16x128xf32>
    %24 = arith.cmpf oeq, %22, %23 : vector<16x128xf32>
    %cst_5 = arith.constant -1.000000e+00 : f32
    %25 = vector.broadcast %cst_5 : f32 to vector<16x128xf32>
    %26 = arith.cmpf oeq, %22, %25 : vector<16x128xf32>
    %27 = arith.ori %24, %26 : vector<16x128xi1>
    %c15_i32 = arith.constant 15 : i32
    %28 = tpu.dynamic_rotate %19 by %c15_i32 dim 0 : vector<16x128xf32>, i32 -> vector<16x128xf32>
    %29 = arith.subf %28, %19 : vector<16x128xf32>
    %cst_6 = arith.constant 1.000000e+00 : f32
    %30 = vector.broadcast %cst_6 : f32 to vector<16x128xf32>
    %31 = arith.cmpf oeq, %29, %30 : vector<16x128xf32>
    %cst_7 = arith.constant -1.000000e+00 : f32
    %32 = vector.broadcast %cst_7 : f32 to vector<16x128xf32>
    %33 = arith.cmpf oeq, %29, %32 : vector<16x128xf32>
    %34 = arith.ori %31, %33 : vector<16x128xi1>
    %c1_i32_8 = arith.constant 1 : i32
    %35 = tpu.dynamic_rotate %20 by %c1_i32_8 dim 1 : vector<16x128xf32>, i32 -> vector<16x128xf32>
    %36 = arith.subf %35, %20 : vector<16x128xf32>
    %cst_9 = arith.constant 1.000000e+00 : f32
    %37 = vector.broadcast %cst_9 : f32 to vector<16x128xf32>
    %38 = arith.cmpf oeq, %36, %37 : vector<16x128xf32>
    %cst_10 = arith.constant -1.000000e+00 : f32
    %39 = vector.broadcast %cst_10 : f32 to vector<16x128xf32>
    %40 = arith.cmpf oeq, %36, %39 : vector<16x128xf32>
    %41 = arith.ori %38, %40 : vector<16x128xi1>
    %c127_i32 = arith.constant 127 : i32
    %42 = tpu.dynamic_rotate %20 by %c127_i32 dim 1 : vector<16x128xf32>, i32 -> vector<16x128xf32>
    %43 = arith.subf %42, %20 : vector<16x128xf32>
    %cst_11 = arith.constant 1.000000e+00 : f32
    %44 = vector.broadcast %cst_11 : f32 to vector<16x128xf32>
    %45 = arith.cmpf oeq, %43, %44 : vector<16x128xf32>
    %cst_12 = arith.constant -1.000000e+00 : f32
    %46 = vector.broadcast %cst_12 : f32 to vector<16x128xf32>
    %47 = arith.cmpf oeq, %43, %46 : vector<16x128xf32>
    %48 = arith.ori %45, %47 : vector<16x128xi1>
    %cst_13 = arith.constant 1.000000e+00 : f32
    %49 = vector.broadcast %cst_13 : f32 to vector<16x128xf32>
    %50 = arith.cmpf oeq, %0, %49 : vector<16x128xf32>
    %cst_14 = arith.constant 1.600000e+01 : f32
    %51 = vector.broadcast %cst_14 : f32 to vector<16x128xf32>
    %52 = arith.mulf %19, %51 : vector<16x128xf32>
    %53 = arith.addf %52, %20 : vector<16x128xf32>
    %cst_15 = arith.constant 2.560000e+02 : f32
    %54 = vector.broadcast %cst_15 : f32 to vector<16x128xf32>
    %55 = arith.subf %54, %53 : vector<16x128xf32>
    %56 = arith.mulf %0, %55 : vector<16x128xf32>
    %57 = tpu.iota {dimensions = array<i32: 0>} : vector<264x128xi32>
    %58 = arith.sitofp %57 : vector<264x128xi32> to vector<264x128xf32>
    %cst_16 = arith.constant 0xFF800000 : f32
    %c0_i32_17 = arith.constant 0 : i32
    %c-1_i32 = arith.constant -1 : i32
    %59:3 = scf.while (%arg2 = %56, %arg3 = %c0_i32_17, %arg4 = %c-1_i32) : (vector<16x128xf32>, i32, i32) -> (vector<16x128xf32>, i32, i32) {
      %61 = arith.cmpi ne, %arg4, %arg3 : i32
      scf.condition(%61) %arg2, %arg3, %arg4 : vector<16x128xf32>, i32, i32
    } do {
    ^bb0(%arg2: vector<16x128xf32>, %arg3: i32, %arg4: i32):
      %c1_i32_20 = arith.constant 1 : i32
      %61 = tpu.dynamic_rotate %arg2 by %c1_i32_20 dim 0 : vector<16x128xf32>, i32 -> vector<16x128xf32>
      %62 = vector.broadcast %cst_16 : f32 to vector<16x128xf32>
      %63 = arith.select %27, %61, %62 : vector<16x128xi1>, vector<16x128xf32>
      %c15_i32_21 = arith.constant 15 : i32
      %64 = tpu.dynamic_rotate %arg2 by %c15_i32_21 dim 0 : vector<16x128xf32>, i32 -> vector<16x128xf32>
      %65 = vector.broadcast %cst_16 : f32 to vector<16x128xf32>
      %66 = arith.select %34, %64, %65 : vector<16x128xi1>, vector<16x128xf32>
      %67 = arith.maximumf %63, %66 : vector<16x128xf32>
      %68 = arith.maximumf %arg2, %67 : vector<16x128xf32>
      %c1_i32_22 = arith.constant 1 : i32
      %69 = tpu.dynamic_rotate %68 by %c1_i32_22 dim 1 : vector<16x128xf32>, i32 -> vector<16x128xf32>
      %70 = vector.broadcast %cst_16 : f32 to vector<16x128xf32>
      %71 = arith.select %41, %69, %70 : vector<16x128xi1>, vector<16x128xf32>
      %c127_i32_23 = arith.constant 127 : i32
      %72 = tpu.dynamic_rotate %68 by %c127_i32_23 dim 1 : vector<16x128xf32>, i32 -> vector<16x128xf32>
      %73 = vector.broadcast %cst_16 : f32 to vector<16x128xf32>
      %74 = arith.select %48, %72, %73 : vector<16x128xi1>, vector<16x128xf32>
      %75 = arith.maximumf %71, %74 : vector<16x128xf32>
      %76 = arith.maximumf %68, %75 : vector<16x128xf32>
      %77 = arith.select %50, %76, %arg2 : vector<16x128xi1>, vector<16x128xf32>
      %cst_24 = arith.constant 0.000000e+00 : f32
      %78 = vector.broadcast %cst_24 : f32 to vector<264x128xf32>
      %79 = vector.extract_strided_slice %77 {offsets = [0, 0], sizes = [1, 128], strides = [1, 1]} : vector<16x128xf32> to vector<1x128xf32>
      %80 = vector.shape_cast %79 : vector<1x128xf32> to vector<1x128xf32>
      %81 = vector.broadcast %80 : vector<1x128xf32> to vector<264x128xf32>
      %82 = arith.cmpf oeq, %58, %81 : vector<264x128xf32>
      %cst_25 = arith.constant 1.000000e+00 : f32
      %83 = vector.broadcast %cst_25 : f32 to vector<264x128xf32>
      %84 = arith.select %82, %83, %78 : vector<264x128xi1>, vector<264x128xf32>
      %85 = vector.extract_strided_slice %77 {offsets = [1, 0], sizes = [1, 128], strides = [1, 1]} : vector<16x128xf32> to vector<1x128xf32>
      %86 = vector.shape_cast %85 : vector<1x128xf32> to vector<1x128xf32>
      %87 = vector.broadcast %86 : vector<1x128xf32> to vector<264x128xf32>
      %88 = arith.cmpf oeq, %58, %87 : vector<264x128xf32>
      %cst_26 = arith.constant 1.000000e+00 : f32
      %89 = vector.broadcast %cst_26 : f32 to vector<264x128xf32>
      %90 = arith.select %88, %89, %84 : vector<264x128xi1>, vector<264x128xf32>
      %91 = vector.extract_strided_slice %77 {offsets = [2, 0], sizes = [1, 128], strides = [1, 1]} : vector<16x128xf32> to vector<1x128xf32>
      %92 = vector.shape_cast %91 : vector<1x128xf32> to vector<1x128xf32>
      %93 = vector.broadcast %92 : vector<1x128xf32> to vector<264x128xf32>
      %94 = arith.cmpf oeq, %58, %93 : vector<264x128xf32>
      %cst_27 = arith.constant 1.000000e+00 : f32
      %95 = vector.broadcast %cst_27 : f32 to vector<264x128xf32>
      %96 = arith.select %94, %95, %90 : vector<264x128xi1>, vector<264x128xf32>
      %97 = vector.extract_strided_slice %77 {offsets = [3, 0], sizes = [1, 128], strides = [1, 1]} : vector<16x128xf32> to vector<1x128xf32>
      %98 = vector.shape_cast %97 : vector<1x128xf32> to vector<1x128xf32>
      %99 = vector.broadcast %98 : vector<1x128xf32> to vector<264x128xf32>
      %100 = arith.cmpf oeq, %58, %99 : vector<264x128xf32>
      %cst_28 = arith.constant 1.000000e+00 : f32
      %101 = vector.broadcast %cst_28 : f32 to vector<264x128xf32>
      %102 = arith.select %100, %101, %96 : vector<264x128xi1>, vector<264x128xf32>
      %103 = vector.extract_strided_slice %77 {offsets = [4, 0], sizes = [1, 128], strides = [1, 1]} : vector<16x128xf32> to vector<1x128xf32>
      %104 = vector.shape_cast %103 : vector<1x128xf32> to vector<1x128xf32>
      %105 = vector.broadcast %104 : vector<1x128xf32> to vector<264x128xf32>
      %106 = arith.cmpf oeq, %58, %105 : vector<264x128xf32>
      %cst_29 = arith.constant 1.000000e+00 : f32
      %107 = vector.broadcast %cst_29 : f32 to vector<264x128xf32>
      %108 = arith.select %106, %107, %102 : vector<264x128xi1>, vector<264x128xf32>
      %109 = vector.extract_strided_slice %77 {offsets = [5, 0], sizes = [1, 128], strides = [1, 1]} : vector<16x128xf32> to vector<1x128xf32>
      %110 = vector.shape_cast %109 : vector<1x128xf32> to vector<1x128xf32>
      %111 = vector.broadcast %110 : vector<1x128xf32> to vector<264x128xf32>
      %112 = arith.cmpf oeq, %58, %111 : vector<264x128xf32>
      %cst_30 = arith.constant 1.000000e+00 : f32
      %113 = vector.broadcast %cst_30 : f32 to vector<264x128xf32>
      %114 = arith.select %112, %113, %108 : vector<264x128xi1>, vector<264x128xf32>
      %115 = vector.extract_strided_slice %77 {offsets = [6, 0], sizes = [1, 128], strides = [1, 1]} : vector<16x128xf32> to vector<1x128xf32>
      %116 = vector.shape_cast %115 : vector<1x128xf32> to vector<1x128xf32>
      %117 = vector.broadcast %116 : vector<1x128xf32> to vector<264x128xf32>
      %118 = arith.cmpf oeq, %58, %117 : vector<264x128xf32>
      %cst_31 = arith.constant 1.000000e+00 : f32
      %119 = vector.broadcast %cst_31 : f32 to vector<264x128xf32>
      %120 = arith.select %118, %119, %114 : vector<264x128xi1>, vector<264x128xf32>
      %121 = vector.extract_strided_slice %77 {offsets = [7, 0], sizes = [1, 128], strides = [1, 1]} : vector<16x128xf32> to vector<1x128xf32>
      %122 = vector.shape_cast %121 : vector<1x128xf32> to vector<1x128xf32>
      %123 = vector.broadcast %122 : vector<1x128xf32> to vector<264x128xf32>
      %124 = arith.cmpf oeq, %58, %123 : vector<264x128xf32>
      %cst_32 = arith.constant 1.000000e+00 : f32
      %125 = vector.broadcast %cst_32 : f32 to vector<264x128xf32>
      %126 = arith.select %124, %125, %120 : vector<264x128xi1>, vector<264x128xf32>
      %127 = vector.extract_strided_slice %77 {offsets = [8, 0], sizes = [1, 128], strides = [1, 1]} : vector<16x128xf32> to vector<1x128xf32>
      %128 = vector.shape_cast %127 : vector<1x128xf32> to vector<1x128xf32>
      %129 = vector.broadcast %128 : vector<1x128xf32> to vector<264x128xf32>
      %130 = arith.cmpf oeq, %58, %129 : vector<264x128xf32>
      %cst_33 = arith.constant 1.000000e+00 : f32
      %131 = vector.broadcast %cst_33 : f32 to vector<264x128xf32>
      %132 = arith.select %130, %131, %126 : vector<264x128xi1>, vector<264x128xf32>
      %133 = vector.extract_strided_slice %77 {offsets = [9, 0], sizes = [1, 128], strides = [1, 1]} : vector<16x128xf32> to vector<1x128xf32>
      %134 = vector.shape_cast %133 : vector<1x128xf32> to vector<1x128xf32>
      %135 = vector.broadcast %134 : vector<1x128xf32> to vector<264x128xf32>
      %136 = arith.cmpf oeq, %58, %135 : vector<264x128xf32>
      %cst_34 = arith.constant 1.000000e+00 : f32
      %137 = vector.broadcast %cst_34 : f32 to vector<264x128xf32>
      %138 = arith.select %136, %137, %132 : vector<264x128xi1>, vector<264x128xf32>
      %139 = vector.extract_strided_slice %77 {offsets = [10, 0], sizes = [1, 128], strides = [1, 1]} : vector<16x128xf32> to vector<1x128xf32>
      %140 = vector.shape_cast %139 : vector<1x128xf32> to vector<1x128xf32>
      %141 = vector.broadcast %140 : vector<1x128xf32> to vector<264x128xf32>
      %142 = arith.cmpf oeq, %58, %141 : vector<264x128xf32>
      %cst_35 = arith.constant 1.000000e+00 : f32
      %143 = vector.broadcast %cst_35 : f32 to vector<264x128xf32>
      %144 = arith.select %142, %143, %138 : vector<264x128xi1>, vector<264x128xf32>
      %145 = vector.extract_strided_slice %77 {offsets = [11, 0], sizes = [1, 128], strides = [1, 1]} : vector<16x128xf32> to vector<1x128xf32>
      %146 = vector.shape_cast %145 : vector<1x128xf32> to vector<1x128xf32>
      %147 = vector.broadcast %146 : vector<1x128xf32> to vector<264x128xf32>
      %148 = arith.cmpf oeq, %58, %147 : vector<264x128xf32>
      %cst_36 = arith.constant 1.000000e+00 : f32
      %149 = vector.broadcast %cst_36 : f32 to vector<264x128xf32>
      %150 = arith.select %148, %149, %144 : vector<264x128xi1>, vector<264x128xf32>
      %151 = vector.extract_strided_slice %77 {offsets = [12, 0], sizes = [1, 128], strides = [1, 1]} : vector<16x128xf32> to vector<1x128xf32>
      %152 = vector.shape_cast %151 : vector<1x128xf32> to vector<1x128xf32>
      %153 = vector.broadcast %152 : vector<1x128xf32> to vector<264x128xf32>
      %154 = arith.cmpf oeq, %58, %153 : vector<264x128xf32>
      %cst_37 = arith.constant 1.000000e+00 : f32
      %155 = vector.broadcast %cst_37 : f32 to vector<264x128xf32>
      %156 = arith.select %154, %155, %150 : vector<264x128xi1>, vector<264x128xf32>
      %157 = vector.extract_strided_slice %77 {offsets = [13, 0], sizes = [1, 128], strides = [1, 1]} : vector<16x128xf32> to vector<1x128xf32>
      %158 = vector.shape_cast %157 : vector<1x128xf32> to vector<1x128xf32>
      %159 = vector.broadcast %158 : vector<1x128xf32> to vector<264x128xf32>
      %160 = arith.cmpf oeq, %58, %159 : vector<264x128xf32>
      %cst_38 = arith.constant 1.000000e+00 : f32
      %161 = vector.broadcast %cst_38 : f32 to vector<264x128xf32>
      %162 = arith.select %160, %161, %156 : vector<264x128xi1>, vector<264x128xf32>
      %163 = vector.extract_strided_slice %77 {offsets = [14, 0], sizes = [1, 128], strides = [1, 1]} : vector<16x128xf32> to vector<1x128xf32>
      %164 = vector.shape_cast %163 : vector<1x128xf32> to vector<1x128xf32>
      %165 = vector.broadcast %164 : vector<1x128xf32> to vector<264x128xf32>
      %166 = arith.cmpf oeq, %58, %165 : vector<264x128xf32>
      %cst_39 = arith.constant 1.000000e+00 : f32
      %167 = vector.broadcast %cst_39 : f32 to vector<264x128xf32>
      %168 = arith.select %166, %167, %162 : vector<264x128xi1>, vector<264x128xf32>
      %169 = vector.extract_strided_slice %77 {offsets = [15, 0], sizes = [1, 128], strides = [1, 1]} : vector<16x128xf32> to vector<1x128xf32>
      %170 = vector.shape_cast %169 : vector<1x128xf32> to vector<1x128xf32>
      %171 = vector.broadcast %170 : vector<1x128xf32> to vector<264x128xf32>
      %172 = arith.cmpf oeq, %58, %171 : vector<264x128xf32>
      %cst_40 = arith.constant 1.000000e+00 : f32
      %173 = vector.broadcast %cst_40 : f32 to vector<264x128xf32>
      %174 = arith.select %172, %173, %168 : vector<264x128xi1>, vector<264x128xf32>
      %cst_41 = arith.constant dense<0xFF800000> : vector<264xf32>
      %175 = vector.multi_reduction <maximumf>, %174, %cst_41 [1] : vector<264x128xf32> to vector<264xf32>
      %176 = vector.shape_cast %175 : vector<264xf32> to vector<264x1xf32>
      %177 = vector.shape_cast %176 : vector<264x1xf32> to vector<1x264x1xf32>
      %cst_42 = arith.constant dense<0.000000e+00> : vector<1xf32>
      %178 = vector.multi_reduction <add>, %177, %cst_42 [1, 2] : vector<1x264x1xf32> to vector<1xf32>
      %179 = vector.shape_cast %178 : vector<1xf32> to vector<1x1x1xf32>
      %180 = vector.extract %179[0, 0, 0] : f32 from vector<1x1x1xf32>
      %181 = arith.fptosi %180 : f32 to i32
      scf.yield %77, %arg4, %181 : vector<16x128xf32>, i32, i32
    }
    %c0_18 = arith.constant 0 : index
    %c0_19 = arith.constant 0 : index
    %60 = vector.load %arg1[%c0_18, %c0_19] : memref<16x128xf32, #tpu.memory_space<vmem>>, vector<16x128xf32>
    tpu.vector_store %arg1[%c0_18, %c0_19], %59#0 {strides = array<i32>} : memref<16x128xf32, #tpu.memory_space<vmem>>, vector<16x128xf32>,
    return
  }
}

</mosaic_0001>

<llo_original>
// kernel: connected_components.1
$region0: #{connected_components.1}
  #allocation0 [shape = 'u32[]', space=smem, size = 0x4, offset = 0x4, fixed_abs, tag = 'smem constant byte address 0x4 - core index']
  #allocation1 [shape = 'u32[72,128]{1,0:T(1,128)}', space=vmem, size = 0x9000, scoped, tag = 'internal scratch']
  %s0 = inlined_call_operand.vmem [shape: f32[16,128], index: 0, kind: input, shape index: {}]
  %s1 = inlined_call_operand.vmem [shape: f32[16,128], index: 1, kind: output, shape index: {}]
  %s2 = sld [smem:[#allocation0]]
  $region21: #{connected_components.1} parent=0
    _
  %s4 = ssub.s32 1, %s2
  %s5 = scalar_select 0, %s4, %s2
  // Predicated region
  $region2: #{connected_components.1} parent=0 // pred_check
    _
  $region3: #{connected_components.1} parent=0 // pred_check_branch
    %7 = sbr.rel (0) target = $region5
  $region4: #{connected_components.1} parent=0 // pred_region
    _
  $region5: #{connected_components.1} parent=0 // pred_fallthru
    _
  %v8 = vld [vmem:[%s0] sm:$0xff]
  %v9 = vld [vmem:[%s0 + $0x8] sm:$0xff]
  %v10 = vlaneseq
  %v11 = vshrl.u32 %v10, 7
  %v12 = vadd.s32 %v11, 8
  %v13 = vlaneseq
  %v14 = vand.u32 %v13, 127
  %vm15 = vcmp.lt.s32.totalorder %v14, 0
  %v16 = vsub.s32 0, %v14
  %v17 = vsel %vm15, %v16, %v14
  %v18 = vshrl.u32 %v17, 4
  %v19 = vand.u32 %v17, 15
  %v20 = vsub.s32 0, %v19
  %v21 = vsel %vm15, %v20, %v19
  %vm22 = vcmp.ne.s32.totalorder %v21, 0
  %vm23 = vcmp.lt.s32.totalorder %v21, 0
  %vm24 = vmand %vm23, %vm22
  %v25 = vadd.s32 %v21, 16
  %v26 = vsel %vm24, %v25, %v21
  %v27 = vcvt.s32.f32 %v11
  %v28 = vcvt.s32.f32 %v12
  %v29 = vcvt.s32.f32 %v26
  %v30 = vrot.slane %v27, 7
  %v31 = vrot.slane %v28, 7
  %vm32 = vcmp.lt.s32.totalorder %v11, 1
  %v33 = vsel %vm32, %v30, %v31
  %v34 = vsel %vm32, %v31, %v30
  %v35 = vsub.f32 %v34, %v27
  %v36 = vsub.f32 %v33, %v28
  %vm37 = vcmp.eq.f32.partialorder %v35, 1.0
  %vm38 = vcmp.eq.f32.partialorder %v36, 1.0
  %vm39 = vcmp.eq.f32.partialorder %v35, -1.0
  %vm40 = vcmp.eq.f32.partialorder %v36, -1.0
  %vm41 = vmor %vm37, %vm39
  %vm42 = vmor %vm38, %vm40
  %v43 = vrot.slane %v27, 1
  %v44 = vrot.slane %v28, 1
  %vm45 = vcmp.lt.s32.totalorder %v11, 7
  %v46 = vsel %vm45, %v43, %v44
  %v47 = vsel %vm45, %v44, %v43
  %v48 = vsub.f32 %v46, %v27
  %v49 = vsub.f32 %v47, %v28
  %vm50 = vcmp.eq.f32.partialorder %v48, 1.0
  %vm51 = vcmp.eq.f32.partialorder %v49, 1.0
  %vm52 = vcmp.eq.f32.partialorder %v48, -1.0
  %vm53 = vcmp.eq.f32.partialorder %v49, -1.0
  %vm54 = vmor %vm50, %vm52
  %vm55 = vmor %vm51, %vm53
  %56 = vrot.lane.b32.xlu0 %v29, 1
  %v57 = vpop.permute.xlu0 %56
  %v58 = vsub.f32 %v57, %v29
  %vm59 = vcmp.eq.f32.partialorder %v58, 1.0
  %vm60 = vcmp.eq.f32.partialorder %v58, -1.0
  %vm61 = vmor %vm59, %vm60
  %62 = vrot.lane.b32.xlu0 %v29, 127
  %v63 = vpop.permute.xlu0 %62
  %v64 = vsub.f32 %v63, %v29
  %vm65 = vcmp.eq.f32.partialorder %v64, 1.0
  %vm66 = vcmp.eq.f32.partialorder %v64, -1.0
  %vm67 = vmor %vm65, %vm66
  %vm68 = vcmp.eq.f32.partialorder %v8, 1.0
  %vm69 = vcmp.eq.f32.partialorder %v9, 1.0
  %v70 = vmul.f32 %v27, 16.0
  %v71 = vmul.f32 %v28, 16.0
  %v72 = vadd.f32 %v70, %v29
  %v73 = vadd.f32 %v71, %v29
  %v74 = vsub.f32 256.0, %v72
  %v75 = vsub.f32 256.0, %v73
  %v76 = vmul.f32 %v8, %v74
  %v77 = vmul.f32 %v9, %v75
  %v78 = vadd.s32 %v11, 16
  %v79 = vadd.s32 %v11, 24
  %v80 = vadd.s32 %v11, 32
  %v81 = vadd.s32 %v11, 40
  %v82 = vadd.s32 %v11, 48
  %v83 = vadd.s32 %v11, 56
  %v84 = vadd.s32 %v11, 64
  %v85 = vadd.s32 %v11, 72
  %v86 = vadd.s32 %v11, 80
  %v87 = vadd.s32 %v11, 88
  %v88 = vadd.s32 %v11, 96
  %v89 = vadd.s32 %v11, 104
  %v90 = vadd.s32 %v11, 112
  %v91 = vadd.s32 %v11, 120
  %v92 = vadd.s32 %v11, 128
  %v93 = vadd.s32 %v11, 136
  %v94 = vadd.s32 %v11, 144
  %v95 = vadd.s32 %v11, 152
  %v96 = vadd.s32 %v11, 160
  %v97 = vadd.s32 %v11, 168
  %v98 = vadd.s32 %v11, 176
  %v99 = vadd.s32 %v11, 184
  %v100 = vadd.s32 %v11, 192
  %v101 = vadd.s32 %v11, 200
  %v102 = vadd.s32 %v11, 208
  %v103 = vadd.s32 %v11, 216
  %v104 = vadd.s32 %v11, 224
  %v105 = vadd.s32 %v11, 232
  %v106 = vadd.s32 %v11, 240
  %v107 = vadd.s32 %v11, 248
  %v108 = vadd.s32 %v11, 256
  %v109 = vcvt.s32.f32 %v78
  %v110 = vcvt.s32.f32 %v79
  %v111 = vcvt.s32.f32 %v80
  %v112 = vcvt.s32.f32 %v81
  %v113 = vcvt.s32.f32 %v82
  %v114 = vcvt.s32.f32 %v83
  %v115 = vcvt.s32.f32 %v84
  %v116 = vcvt.s32.f32 %v85
  %v117 = vcvt.s32.f32 %v86
  %v118 = vcvt.s32.f32 %v87
  %v119 = vcvt.s32.f32 %v88
  %v120 = vcvt.s32.f32 %v89
  %v121 = vcvt.s32.f32 %v90
  %v122 = vcvt.s32.f32 %v91
  %v123 = vcvt.s32.f32 %v92
  %v124 = vcvt.s32.f32 %v93
  %v125 = vcvt.s32.f32 %v94
  %v126 = vcvt.s32.f32 %v95
  %v127 = vcvt.s32.f32 %v96
  %v128 = vcvt.s32.f32 %v97
  %v129 = vcvt.s32.f32 %v98
  %v130 = vcvt.s32.f32 %v99
  %v131 = vcvt.s32.f32 %v100
  %v132 = vcvt.s32.f32 %v101
  %v133 = vcvt.s32.f32 %v102
  %v134 = vcvt.s32.f32 %v103
  %v135 = vcvt.s32.f32 %v104
  %v136 = vcvt.s32.f32 %v105
  %v137 = vcvt.s32.f32 %v106
  %v138 = vcvt.s32.f32 %v107
  %v139 = vcvt.s32.f32 %v108
  // While loop
  $region6: #{connected_components.1} parent=0 // loop_pre_header
    _
  $region7: #{connected_components.1} parent=0 // loop_header
    %v141 = vphi %v76, %v181
    %v142 = vphi %v77, %v182
    %s143 = sphi 0, %s144
    %s144 = sphi 4294967295, %s1396
    %p145 = scmp.ne.s32.totalorder %s144, %s143
    %p146 = pneg %p145
  $region8: #{connected_components.1} parent=0 // loop_header_branch
    %148 = sbr.rel (%p146) target = $region12
  $region9: #{connected_components.1} parent=0 // loop_body
    %v149 = vrot.slane %v141, 7
    %v150 = vrot.slane %v142, 7
    %v151 = vsel %vm32, %v149, %v150
    %v152 = vsel %vm32, %v150, %v149
    %v153 = vsel %vm41, %v152, -inf
    %v154 = vsel %vm42, %v151, -inf
    %v155 = vrot.slane %v141, 1
    %v156 = vrot.slane %v142, 1
    %v157 = vsel %vm45, %v155, %v156
    %v158 = vsel %vm45, %v156, %v155
    %v159 = vsel %vm54, %v157, -inf
    %v160 = vsel %vm55, %v158, -inf
    %v161 = vmax.f32 %v153, %v159
    %v162 = vmax.f32 %v154, %v160
    %v163 = vmax.f32 %v141, %v161
    %v164 = vmax.f32 %v142, %v162
    %165 = vrot.lane.b32.xlu0 %v163, 1
    %v166 = vpop.permute.xlu0 %165
    %167 = vrot.lane.b32.xlu0 %v164, 1
    %v168 = vpop.permute.xlu0 %167
    %v169 = vsel %vm61, %v166, -inf
    %v170 = vsel %vm61, %v168, -inf
    %171 = vrot.lane.b32.xlu0 %v163, 127
    %v172 = vpop.permute.xlu0 %171
    %173 = vrot.lane.b32.xlu0 %v164, 127
    %v174 = vpop.permute.xlu0 %173
    %v175 = vsel %vm67, %v172, -inf
    %v176 = vsel %vm67, %v174, -inf
    %v177 = vmax.f32 %v169, %v175
    %v178 = vmax.f32 %v170, %v176
    %v179 = vmax.f32 %v163, %v177
    %v180 = vmax.f32 %v164, %v178
    %v181 = vsel %vm68, %v179, %v141
    %v182 = vsel %vm69, %v180, %v142
    %v183 = vperm.slane %v181, 0
    %vm184 = vcmp.eq.f32.partialorder %v27, %v183
    %vm185 = vcmp.eq.f32.partialorder %v28, %v183
    %vm186 = vcmp.eq.f32.partialorder %v109, %v183
    %vm187 = vcmp.eq.f32.partialorder %v110, %v183
    %vm188 = vcmp.eq.f32.partialorder %v111, %v183
    %vm189 = vcmp.eq.f32.partialorder %v112, %v183
    %vm190 = vcmp.eq.f32.partialorder %v113, %v183
    %vm191 = vcmp.eq.f32.partialorder %v114, %v183
    %vm192 = vcmp.eq.f32.partialorder %v115, %v183
    %vm193 = vcmp.eq.f32.partialorder %v116, %v183
    %vm194 = vcmp.eq.f32.partialorder %v117, %v183
    %vm195 = vcmp.eq.f32.partialorder %v118, %v183
    %vm196 = vcmp.eq.f32.partialorder %v119, %v183
    %vm197 = vcmp.eq.f32.partialorder %v120, %v183
    %vm198 = vcmp.eq.f32.partialorder %v121, %v183
    %vm199 = vcmp.eq.f32.partialorder %v122, %v183
    %vm200 = vcmp.eq.f32.partialorder %v123, %v183
    %vm201 = vcmp.eq.f32.partialorder %v124, %v183
    %vm202 = vcmp.eq.f32.partialorder %v125, %v183
    %vm203 = vcmp.eq.f32.partialorder %v126, %v183
    %vm204 = vcmp.eq.f32.partialorder %v127, %v183
    %vm205 = vcmp.eq.f32.partialorder %v128, %v183
    %vm206 = vcmp.eq.f32.partialorder %v129, %v183
    %vm207 = vcmp.eq.f32.partialorder %v130, %v183
    %vm208 = vcmp.eq.f32.partialorder %v131, %v183
    %vm209 = vcmp.eq.f32.partialorder %v132, %v183
    %vm210 = vcmp.eq.f32.partialorder %v133, %v183
    %vm211 = vcmp.eq.f32.partialorder %v134, %v183
    %vm212 = vcmp.eq.f32.partialorder %v135, %v183
    %vm213 = vcmp.eq.f32.partialorder %v136, %v183
    %vm214 = vcmp.eq.f32.partialorder %v137, %v183
    %vm215 = vcmp.eq.f32.partialorder %v138, %v183
    %vm216 = vcmp.eq.f32.partialorder %v139, %v183
    %v217 = vsel %vm184, 1.0, 0.0
    %v218 = vsel %vm185, 1.0, 0.0
    %v219 = vsel %vm186, 1.0, 0.0
    %v220 = vsel %vm187, 1.0, 0.0
    %v221 = vsel %vm188, 1.0, 0.0
    %v222 = vsel %vm189, 1.0, 0.0
    %v223 = vsel %vm190, 1.0, 0.0
    %v224 = vsel %vm191, 1.0, 0.0
    %v225 = vsel %vm192, 1.0, 0.0
    %v226 = vsel %vm193, 1.0, 0.0
    %v227 = vsel %vm194, 1.0, 0.0
    %v228 = vsel %vm195, 1.0, 0.0
    %v229 = vsel %vm196, 1.0, 0.0
    %v230 = vsel %vm197, 1.0, 0.0
    %v231 = vsel %vm198, 1.0, 0.0
    %v232 = vsel %vm199, 1.0, 0.0
    %v233 = vsel %vm200, 1.0, 0.0
    %v234 = vsel %vm201, 1.0, 0.0
    %v235 = vsel %vm202, 1.0, 0.0
    %v236 = vsel %vm203, 1.0, 0.0
    %v237 = vsel %vm204, 1.0, 0.0
    %v238 = vsel %vm205, 1.0, 0.0
    %v239 = vsel %vm206, 1.0, 0.0
    %v240 = vsel %vm207, 1.0, 0.0
    %v241 = vsel %vm208, 1.0, 0.0
    %v242 = vsel %vm209, 1.0, 0.0
    %v243 = vsel %vm210, 1.0, 0.0
    %v244 = vsel %vm211, 1.0, 0.0
    %v245 = vsel %vm212, 1.0, 0.0
    %v246 = vsel %vm213, 1.0, 0.0
    %v247 = vsel %vm214, 1.0, 0.0
    %v248 = vsel %vm215, 1.0, 0.0
    %v249 = vsel %vm216, 1.0, 0.0
    %v250 = vperm.slane %v181, 1
    %vm251 = vcmp.eq.f32.partialorder %v27, %v250
    %vm252 = vcmp.eq.f32.partialorder %v28, %v250
    %vm253 = vcmp.eq.f32.partialorder %v109, %v250
    %vm254 = vcmp.eq.f32.partialorder %v110, %v250
    %vm255 = vcmp.eq.f32.partialorder %v111, %v250
    %vm256 = vcmp.eq.f32.partialorder %v112, %v250
    %vm257 = vcmp.eq.f32.partialorder %v113, %v250
    %vm258 = vcmp.eq.f32.partialorder %v114, %v250
    %vm259 = vcmp.eq.f32.partialorder %v115, %v250
    %vm260 = vcmp.eq.f32.partialorder %v116, %v250
    %vm261 = vcmp.eq.f32.partialorder %v117, %v250
    %vm262 = vcmp.eq.f32.partialorder %v118, %v250
    %vm263 = vcmp.eq.f32.partialorder %v119, %v250
    %vm264 = vcmp.eq.f32.partialorder %v120, %v250
    %vm265 = vcmp.eq.f32.partialorder %v121, %v250
    %vm266 = vcmp.eq.f32.partialorder %v122, %v250
    %vm267 = vcmp.eq.f32.partialorder %v123, %v250
    %vm268 = vcmp.eq.f32.partialorder %v124, %v250
    %vm269 = vcmp.eq.f32.partialorder %v125, %v250
    %vm270 = vcmp.eq.f32.partialorder %v126, %v250
    %vm271 = vcmp.eq.f32.partialorder %v127, %v250
    %vm272 = vcmp.eq.f32.partialorder %v128, %v250
    %vm273 = vcmp.eq.f32.partialorder %v129, %v250
    %vm274 = vcmp.eq.f32.partialorder %v130, %v250
    %vm275 = vcmp.eq.f32.partialorder %v131, %v250
    %vm276 = vcmp.eq.f32.partialorder %v132, %v250
    %vm277 = vcmp.eq.f32.partialorder %v133, %v250
    %vm278 = vcmp.eq.f32.partialorder %v134, %v250
    %vm279 = vcmp.eq.f32.partialorder %v135, %v250
    %vm280 = vcmp.eq.f32.partialorder %v136, %v250
    %vm281 = vcmp.eq.f32.partialorder %v137, %v250
    %vm282 = vcmp.eq.f32.partialorder %v138, %v250
    %vm283 = vcmp.eq.f32.partialorder %v139, %v250
    %v284 = vsel %vm251, 1.0, %v217
    %v285 = vsel %vm252, 1.0, %v218
    %v286 = vsel %vm253, 1.0, %v219
    %v287 = vsel %vm254, 1.0, %v220
    %v288 = vsel %vm255, 1.0, %v221
    %v289 = vsel %vm256, 1.0, %v222
    %v290 = vsel %vm257, 1.0, %v223
    %v291 = vsel %vm258, 1.0, %v224
    %v292 = vsel %vm259, 1.0, %v225
    %v293 = vsel %vm260, 1.0, %v226
    %v294 = vsel %vm261, 1.0, %v227
    %v295 = vsel %vm262, 1.0, %v228
    %v296 = vsel %vm263, 1.0, %v229
    %v297 = vsel %vm264, 1.0, %v230
    %v298 = vsel %vm265, 1.0, %v231
    %v299 = vsel %vm266, 1.0, %v232
    %v300 = vsel %vm267, 1.0, %v233
    %v301 = vsel %vm268, 1.0, %v234
    %v302 = vsel %vm269, 1.0, %v235
    %v303 = vsel %vm270, 1.0, %v236
    %v304 = vsel %vm271, 1.0, %v237
    %v305 = vsel %vm272, 1.0, %v238
    %v306 = vsel %vm273, 1.0, %v239
    %v307 = vsel %vm274, 1.0, %v240
    %v308 = vsel %vm275, 1.0, %v241
    %v309 = vsel %vm276, 1.0, %v242
    %v310 = vsel %vm277, 1.0, %v243
    %v311 = vsel %vm278, 1.0, %v244
    %v312 = vsel %vm279, 1.0, %v245
    %v313 = vsel %vm280, 1.0, %v246
    %v314 = vsel %vm281, 1.0, %v247
    %v315 = vsel %vm282, 1.0, %v248
    %v316 = vsel %vm283, 1.0, %v249
    %v317 = vperm.slane %v181, 2
    %vm318 = vcmp.eq.f32.partialorder %v27, %v317
    %vm319 = vcmp.eq.f32.partialorder %v28, %v317
    %vm320 = vcmp.eq.f32.partialorder %v109, %v317
    %vm321 = vcmp.eq.f32.partialorder %v110, %v317
    %vm322 = vcmp.eq.f32.partialorder %v111, %v317
    %vm323 = vcmp.eq.f32.partialorder %v112, %v317
    %vm324 = vcmp.eq.f32.partialorder %v113, %v317
    %vm325 = vcmp.eq.f32.partialorder %v114, %v317
    %vm326 = vcmp.eq.f32.partialorder %v115, %v317
    %vm327 = vcmp.eq.f32.partialorder %v116, %v317
    %vm328 = vcmp.eq.f32.partialorder %v117, %v317
    %vm329 = vcmp.eq.f32.partialorder %v118, %v317
    %vm330 = vcmp.eq.f32.partialorder %v119, %v317
    %vm331 = vcmp.eq.f32.partialorder %v120, %v317
    %vm332 = vcmp.eq.f32.partialorder %v121, %v317
    %vm333 = vcmp.eq.f32.partialorder %v122, %v317
    %vm334 = vcmp.eq.f32.partialorder %v123, %v317
    %vm335 = vcmp.eq.f32.partialorder %v124, %v317
    %vm336 = vcmp.eq.f32.partialorder %v125, %v317
    %vm337 = vcmp.eq.f32.partialorder %v126, %v317
    %vm338 = vcmp.eq.f32.partialorder %v127, %v317
    %vm339 = vcmp.eq.f32.partialorder %v128, %v317
    %vm340 = vcmp.eq.f32.partialorder %v129, %v317
    %vm341 = vcmp.eq.f32.partialorder %v130, %v317
    %vm342 = vcmp.eq.f32.partialorder %v131, %v317
    %vm343 = vcmp.eq.f32.partialorder %v132, %v317
    %vm344 = vcmp.eq.f32.partialorder %v133, %v317
    %vm345 = vcmp.eq.f32.partialorder %v134, %v317
    %vm346 = vcmp.eq.f32.partialorder %v135, %v317
    %vm347 = vcmp.eq.f32.partialorder %v136, %v317
    %vm348 = vcmp.eq.f32.partialorder %v137, %v317
    %vm349 = vcmp.eq.f32.partialorder %v138, %v317
    %vm350 = vcmp.eq.f32.partialorder %v139, %v317
    %v351 = vsel %vm318, 1.0, %v284
    %v352 = vsel %vm319, 1.0, %v285
    %v353 = vsel %vm320, 1.0, %v286
    %v354 = vsel %vm321, 1.0, %v287
    %v355 = vsel %vm322, 1.0, %v288
    %v356 = vsel %vm323, 1.0, %v289
    %v357 = vsel %vm324, 1.0, %v290
    %v358 = vsel %vm325, 1.0, %v291
    %v359 = vsel %vm326, 1.0, %v292
    %v360 = vsel %vm327, 1.0, %v293
    %v361 = vsel %vm328, 1.0, %v294
    %v362 = vsel %vm329, 1.0, %v295
    %v363 = vsel %vm330, 1.0, %v296
    %v364 = vsel %vm331, 1.0, %v297
    %v365 = vsel %vm332, 1.0, %v298
    %v366 = vsel %vm333, 1.0, %v299
    %v367 = vsel %vm334, 1.0, %v300
    %v368 = vsel %vm335, 1.0, %v301
    %v369 = vsel %vm336, 1.0, %v302
    %v370 = vsel %vm337, 1.0, %v303
    %v371 = vsel %vm338, 1.0, %v304
    %v372 = vsel %vm339, 1.0, %v305
    %v373 = vsel %vm340, 1.0, %v306
    %v374 = vsel %vm341, 1.0, %v307
    %v375 = vsel %vm342, 1.0, %v308
    %v376 = vsel %vm343, 1.0, %v309
    %v377 = vsel %vm344, 1.0, %v310
    %v378 = vsel %vm345, 1.0, %v311
    %v379 = vsel %vm346, 1.0, %v312
    %v380 = vsel %vm347, 1.0, %v313
    %v381 = vsel %vm348, 1.0, %v314
    %v382 = vsel %vm349, 1.0, %v315
    %v383 = vsel %vm350, 1.0, %v316
    %v384 = vperm.slane %v181, 3
    %vm385 = vcmp.eq.f32.partialorder %v27, %v384
    %vm386 = vcmp.eq.f32.partialorder %v28, %v384
    %vm387 = vcmp.eq.f32.partialorder %v109, %v384
    %vm388 = vcmp.eq.f32.partialorder %v110, %v384
    %vm389 = vcmp.eq.f32.partialorder %v111, %v384
    %vm390 = vcmp.eq.f32.partialorder %v112, %v384
    %vm391 = vcmp.eq.f32.partialorder %v113, %v384
    %vm392 = vcmp.eq.f32.partialorder %v114, %v384
    %vm393 = vcmp.eq.f32.partialorder %v115, %v384
    %vm394 = vcmp.eq.f32.partialorder %v116, %v384
    %vm395 = vcmp.eq.f32.partialorder %v117, %v384
    %vm396 = vcmp.eq.f32.partialorder %v118, %v384
    %vm397 = vcmp.eq.f32.partialorder %v119, %v384
    %vm398 = vcmp.eq.f32.partialorder %v120, %v384
    %vm399 = vcmp.eq.f32.partialorder %v121, %v384
    %vm400 = vcmp.eq.f32.partialorder %v122, %v384
    %vm401 = vcmp.eq.f32.partialorder %v123, %v384
    %vm402 = vcmp.eq.f32.partialorder %v124, %v384
    %vm403 = vcmp.eq.f32.partialorder %v125, %v384
    %vm404 = vcmp.eq.f32.partialorder %v126, %v384
    %vm405 = vcmp.eq.f32.partialorder %v127, %v384
    %vm406 = vcmp.eq.f32.partialorder %v128, %v384
    %vm407 = vcmp.eq.f32.partialorder %v129, %v384
    %vm408 = vcmp.eq.f32.partialorder %v130, %v384
    %vm409 = vcmp.eq.f32.partialorder %v131, %v384
    %vm410 = vcmp.eq.f32.partialorder %v132, %v384
    %vm411 = vcmp.eq.f32.partialorder %v133, %v384
    %vm412 = vcmp.eq.f32.partialorder %v134, %v384
    %vm413 = vcmp.eq.f32.partialorder %v135, %v384
    %vm414 = vcmp.eq.f32.partialorder %v136, %v384
    %vm415 = vcmp.eq.f32.partialorder %v137, %v384
    %vm416 = vcmp.eq.f32.partialorder %v138, %v384
    %vm417 = vcmp.eq.f32.partialorder %v139, %v384
    %v418 = vsel %vm385, 1.0, %v351
    %v419 = vsel %vm386, 1.0, %v352
    %v420 = vsel %vm387, 1.0, %v353
    %v421 = vsel %vm388, 1.0, %v354
    %v422 = vsel %vm389, 1.0, %v355
    %v423 = vsel %vm390, 1.0, %v356
    %v424 = vsel %vm391, 1.0, %v357
    %v425 = vsel %vm392, 1.0, %v358
    %v426 = vsel %vm393, 1.0, %v359
    %v427 = vsel %vm394, 1.0, %v360
    %v428 = vsel %vm395, 1.0, %v361
    %v429 = vsel %vm396, 1.0, %v362
    %v430 = vsel %vm397, 1.0, %v363
    %v431 = vsel %vm398, 1.0, %v364
    %v432 = vsel %vm399, 1.0, %v365
    %v433 = vsel %vm400, 1.0, %v366
    %v434 = vsel %vm401, 1.0, %v367
    %v435 = vsel %vm402, 1.0, %v368
    %v436 = vsel %vm403, 1.0, %v369
    %v437 = vsel %vm404, 1.0, %v370
    %v438 = vsel %vm405, 1.0, %v371
    %v439 = vsel %vm406, 1.0, %v372
    %v440 = vsel %vm407, 1.0, %v373
    %v441 = vsel %vm408, 1.0, %v374
    %v442 = vsel %vm409, 1.0, %v375
    %v443 = vsel %vm410, 1.0, %v376
    %v444 = vsel %vm411, 1.0, %v377
    %v445 = vsel %vm412, 1.0, %v378
    %v446 = vsel %vm413, 1.0, %v379
    %v447 = vsel %vm414, 1.0, %v380
    %v448 = vsel %vm415, 1.0, %v381
    %v449 = vsel %vm416, 1.0, %v382
    %v450 = vsel %vm417, 1.0, %v383
    %v451 = vperm.slane %v181, 4
    %vm452 = vcmp.eq.f32.partialorder %v27, %v451
    %vm453 = vcmp.eq.f32.partialorder %v28, %v451
    %vm454 = vcmp.eq.f32.partialorder %v109, %v451
    %vm455 = vcmp.eq.f32.partialorder %v110, %v451
    %vm456 = vcmp.eq.f32.partialorder %v111, %v451
    %vm457 = vcmp.eq.f32.partialorder %v112, %v451
    %vm458 = vcmp.eq.f32.partialorder %v113, %v451
    %vm459 = vcmp.eq.f32.partialorder %v114, %v451
    %vm460 = vcmp.eq.f32.partialorder %v115, %v451
    %vm461 = vcmp.eq.f32.partialorder %v116, %v451
    %vm462 = vcmp.eq.f32.partialorder %v117, %v451
    %vm463 = vcmp.eq.f32.partialorder %v118, %v451
    %vm464 = vcmp.eq.f32.partialorder %v119, %v451
    %vm465 = vcmp.eq.f32.partialorder %v120, %v451
    %vm466 = vcmp.eq.f32.partialorder %v121, %v451
    %vm467 = vcmp.eq.f32.partialorder %v122, %v451
    %vm468 = vcmp.eq.f32.partialorder %v123, %v451
    %vm469 = vcmp.eq.f32.partialorder %v124, %v451
    %vm470 = vcmp.eq.f32.partialorder %v125, %v451
    %vm471 = vcmp.eq.f32.partialorder %v126, %v451
    %vm472 = vcmp.eq.f32.partialorder %v127, %v451
    %vm473 = vcmp.eq.f32.partialorder %v128, %v451
    %vm474 = vcmp.eq.f32.partialorder %v129, %v451
    %vm475 = vcmp.eq.f32.partialorder %v130, %v451
    %vm476 = vcmp.eq.f32.partialorder %v131, %v451
    %vm477 = vcmp.eq.f32.partialorder %v132, %v451
    %vm478 = vcmp.eq.f32.partialorder %v133, %v451
    %vm479 = vcmp.eq.f32.partialorder %v134, %v451
    %vm480 = vcmp.eq.f32.partialorder %v135, %v451
    %vm481 = vcmp.eq.f32.partialorder %v136, %v451
    %vm482 = vcmp.eq.f32.partialorder %v137, %v451
    %vm483 = vcmp.eq.f32.partialorder %v138, %v451
    %vm484 = vcmp.eq.f32.partialorder %v139, %v451
    %v485 = vsel %vm452, 1.0, %v418
    %v486 = vsel %vm453, 1.0, %v419
    %v487 = vsel %vm454, 1.0, %v420
    %v488 = vsel %vm455, 1.0, %v421
    %v489 = vsel %vm456, 1.0, %v422
    %v490 = vsel %vm457, 1.0, %v423
    %v491 = vsel %vm458, 1.0, %v424
    %v492 = vsel %vm459, 1.0, %v425
    %v493 = vsel %vm460, 1.0, %v426
    %v494 = vsel %vm461, 1.0, %v427
    %v495 = vsel %vm462, 1.0, %v428
    %v496 = vsel %vm463, 1.0, %v429
    %v497 = vsel %vm464, 1.0, %v430
    %v498 = vsel %vm465, 1.0, %v431
    %v499 = vsel %vm466, 1.0, %v432
    %v500 = vsel %vm467, 1.0, %v433
    %v501 = vsel %vm468, 1.0, %v434
    %v502 = vsel %vm469, 1.0, %v435
    %v503 = vsel %vm470, 1.0, %v436
    %v504 = vsel %vm471, 1.0, %v437
    %v505 = vsel %vm472, 1.0, %v438
    %v506 = vsel %vm473, 1.0, %v439
    %v507 = vsel %vm474, 1.0, %v440
    %v508 = vsel %vm475, 1.0, %v441
    %v509 = vsel %vm476, 1.0, %v442
    %v510 = vsel %vm477, 1.0, %v443
    %v511 = vsel %vm478, 1.0, %v444
    %v512 = vsel %vm479, 1.0, %v445
    %v513 = vsel %vm480, 1.0, %v446
    %v514 = vsel %vm481, 1.0, %v447
    %v515 = vsel %vm482, 1.0, %v448
    %v516 = vsel %vm483, 1.0, %v449
    %v517 = vsel %vm484, 1.0, %v450
    %v518 = vperm.slane %v181, 5
    %vm519 = vcmp.eq.f32.partialorder %v27, %v518
    %vm520 = vcmp.eq.f32.partialorder %v28, %v518
    %vm521 = vcmp.eq.f32.partialorder %v109, %v518
    %vm522 = vcmp.eq.f32.partialorder %v110, %v518
    %vm523 = vcmp.eq.f32.partialorder %v111, %v518
    %vm524 = vcmp.eq.f32.partialorder %v112, %v518
    %vm525 = vcmp.eq.f32.partialorder %v113, %v518
    %vm526 = vcmp.eq.f32.partialorder %v114, %v518
    %vm527 = vcmp.eq.f32.partialorder %v115, %v518
    %vm528 = vcmp.eq.f32.partialorder %v116, %v518
    %vm529 = vcmp.eq.f32.partialorder %v117, %v518
    %vm530 = vcmp.eq.f32.partialorder %v118, %v518
    %vm531 = vcmp.eq.f32.partialorder %v119, %v518
    %vm532 = vcmp.eq.f32.partialorder %v120, %v518
    %vm533 = vcmp.eq.f32.partialorder %v121, %v518
    %vm534 = vcmp.eq.f32.partialorder %v122, %v518
    %vm535 = vcmp.eq.f32.partialorder %v123, %v518
    %vm536 = vcmp.eq.f32.partialorder %v124, %v518
    %vm537 = vcmp.eq.f32.partialorder %v125, %v518
    %vm538 = vcmp.eq.f32.partialorder %v126, %v518
    %vm539 = vcmp.eq.f32.partialorder %v127, %v518
    %vm540 = vcmp.eq.f32.partialorder %v128, %v518
    %vm541 = vcmp.eq.f32.partialorder %v129, %v518
    %vm542 = vcmp.eq.f32.partialorder %v130, %v518
    %vm543 = vcmp.eq.f32.partialorder %v131, %v518
    %vm544 = vcmp.eq.f32.partialorder %v132, %v518
    %vm545 = vcmp.eq.f32.partialorder %v133, %v518
    %vm546 = vcmp.eq.f32.partialorder %v134, %v518
    %vm547 = vcmp.eq.f32.partialorder %v135, %v518
    %vm548 = vcmp.eq.f32.partialorder %v136, %v518
    %vm549 = vcmp.eq.f32.partialorder %v137, %v518
    %vm550 = vcmp.eq.f32.partialorder %v138, %v518
    %vm551 = vcmp.eq.f32.partialorder %v139, %v518
    %v552 = vsel %vm519, 1.0, %v485
    %v553 = vsel %vm520, 1.0, %v486
    %v554 = vsel %vm521, 1.0, %v487
    %v555 = vsel %vm522, 1.0, %v488
    %v556 = vsel %vm523, 1.0, %v489
    %v557 = vsel %vm524, 1.0, %v490
    %v558 = vsel %vm525, 1.0, %v491
    %v559 = vsel %vm526, 1.0, %v492
    %v560 = vsel %vm527, 1.0, %v493
    %v561 = vsel %vm528, 1.0, %v494
    %v562 = vsel %vm529, 1.0, %v495
    %v563 = vsel %vm530, 1.0, %v496
    %v564 = vsel %vm531, 1.0, %v497
    %v565 = vsel %vm532, 1.0, %v498
    %v566 = vsel %vm533, 1.0, %v499
    %v567 = vsel %vm534, 1.0, %v500
    %v568 = vsel %vm535, 1.0, %v501
    %v569 = vsel %vm536, 1.0, %v502
    %v570 = vsel %vm537, 1.0, %v503
    %v571 = vsel %vm538, 1.0, %v504
    %v572 = vsel %vm539, 1.0, %v505
    %v573 = vsel %vm540, 1.0, %v506
    %v574 = vsel %vm541, 1.0, %v507
    %v575 = vsel %vm542, 1.0, %v508
    %v576 = vsel %vm543, 1.0, %v509
    %v577 = vsel %vm544, 1.0, %v510
    %v578 = vsel %vm545, 1.0, %v511
    %v579 = vsel %vm546, 1.0, %v512
    %v580 = vsel %vm547, 1.0, %v513
    %v581 = vsel %vm548, 1.0, %v514
    %v582 = vsel %vm549, 1.0, %v515
    %v583 = vsel %vm550, 1.0, %v516
    %v584 = vsel %vm551, 1.0, %v517
    %v585 = vperm.slane %v181, 6
    %vm586 = vcmp.eq.f32.partialorder %v27, %v585
    %vm587 = vcmp.eq.f32.partialorder %v28, %v585
    %vm588 = vcmp.eq.f32.partialorder %v109, %v585
    %vm589 = vcmp.eq.f32.partialorder %v110, %v585
    %vm590 = vcmp.eq.f32.partialorder %v111, %v585
    %vm591 = vcmp.eq.f32.partialorder %v112, %v585
    %vm592 = vcmp.eq.f32.partialorder %v113, %v585
    %vm593 = vcmp.eq.f32.partialorder %v114, %v585
    %vm594 = vcmp.eq.f32.partialorder %v115, %v585
    %vm595 = vcmp.eq.f32.partialorder %v116, %v585
    %vm596 = vcmp.eq.f32.partialorder %v117, %v585
    %vm597 = vcmp.eq.f32.partialorder %v118, %v585
    %vm598 = vcmp.eq.f32.partialorder %v119, %v585
    %vm599 = vcmp.eq.f32.partialorder %v120, %v585
    %vm600 = vcmp.eq.f32.partialorder %v121, %v585
    %vm601 = vcmp.eq.f32.partialorder %v122, %v585
    %vm602 = vcmp.eq.f32.partialorder %v123, %v585
    %vm603 = vcmp.eq.f32.partialorder %v124, %v585
    %vm604 = vcmp.eq.f32.partialorder %v125, %v585
    %vm605 = vcmp.eq.f32.partialorder %v126, %v585
    %vm606 = vcmp.eq.f32.partialorder %v127, %v585
    %vm607 = vcmp.eq.f32.partialorder %v128, %v585
    %vm608 = vcmp.eq.f32.partialorder %v129, %v585
    %vm609 = vcmp.eq.f32.partialorder %v130, %v585
    %vm610 = vcmp.eq.f32.partialorder %v131, %v585
    %vm611 = vcmp.eq.f32.partialorder %v132, %v585
    %vm612 = vcmp.eq.f32.partialorder %v133, %v585
    %vm613 = vcmp.eq.f32.partialorder %v134, %v585
    %vm614 = vcmp.eq.f32.partialorder %v135, %v585
    %vm615 = vcmp.eq.f32.partialorder %v136, %v585
    %vm616 = vcmp.eq.f32.partialorder %v137, %v585
    %vm617 = vcmp.eq.f32.partialorder %v138, %v585
    %vm618 = vcmp.eq.f32.partialorder %v139, %v585
    %v619 = vsel %vm586, 1.0, %v552
    %v620 = vsel %vm587, 1.0, %v553
    %v621 = vsel %vm588, 1.0, %v554
    %v622 = vsel %vm589, 1.0, %v555
    %v623 = vsel %vm590, 1.0, %v556
    %v624 = vsel %vm591, 1.0, %v557
    %v625 = vsel %vm592, 1.0, %v558
    %v626 = vsel %vm593, 1.0, %v559
    %v627 = vsel %vm594, 1.0, %v560
    %v628 = vsel %vm595, 1.0, %v561
    %v629 = vsel %vm596, 1.0, %v562
    %v630 = vsel %vm597, 1.0, %v563
    %v631 = vsel %vm598, 1.0, %v564
    %v632 = vsel %vm599, 1.0, %v565
    %v633 = vsel %vm600, 1.0, %v566
    %v634 = vsel %vm601, 1.0, %v567
    %v635 = vsel %vm602, 1.0, %v568
    %v636 = vsel %vm603, 1.0, %v569
    %v637 = vsel %vm604, 1.0, %v570
    %v638 = vsel %vm605, 1.0, %v571
    %v639 = vsel %vm606, 1.0, %v572
    %v640 = vsel %vm607, 1.0, %v573
    %v641 = vsel %vm608, 1.0, %v574
    %v642 = vsel %vm609, 1.0, %v575
    %v643 = vsel %vm610, 1.0, %v576
    %v644 = vsel %vm611, 1.0, %v577
    %v645 = vsel %vm612, 1.0, %v578
    %v646 = vsel %vm613, 1.0, %v579
    %v647 = vsel %vm614, 1.0, %v580
    %v648 = vsel %vm615, 1.0, %v581
    %v649 = vsel %vm616, 1.0, %v582
    %v650 = vsel %vm617, 1.0, %v583
    %v651 = vsel %vm618, 1.0, %v584
    %v652 = vperm.slane %v181, 7
    %vm653 = vcmp.eq.f32.partialorder %v27, %v652
    %vm654 = vcmp.eq.f32.partialorder %v28, %v652
    %vm655 = vcmp.eq.f32.partialorder %v109, %v652
    %vm656 = vcmp.eq.f32.partialorder %v110, %v652
    %vm657 = vcmp.eq.f32.partialorder %v111, %v652
    %vm658 = vcmp.eq.f32.partialorder %v112, %v652
    %vm659 = vcmp.eq.f32.partialorder %v113, %v652
    %vm660 = vcmp.eq.f32.partialorder %v114, %v652
    %vm661 = vcmp.eq.f32.partialorder %v115, %v652
    %vm662 = vcmp.eq.f32.partialorder %v116, %v652
    %vm663 = vcmp.eq.f32.partialorder %v117, %v652
    %vm664 = vcmp.eq.f32.partialorder %v118, %v652
    %vm665 = vcmp.eq.f32.partialorder %v119, %v652
    %vm666 = vcmp.eq.f32.partialorder %v120, %v652
    %vm667 = vcmp.eq.f32.partialorder %v121, %v652
    %vm668 = vcmp.eq.f32.partialorder %v122, %v652
    %vm669 = vcmp.eq.f32.partialorder %v123, %v652
    %vm670 = vcmp.eq.f32.partialorder %v124, %v652
    %vm671 = vcmp.eq.f32.partialorder %v125, %v652
    %vm672 = vcmp.eq.f32.partialorder %v126, %v652
    %vm673 = vcmp.eq.f32.partialorder %v127, %v652
    %vm674 = vcmp.eq.f32.partialorder %v128, %v652
    %vm675 = vcmp.eq.f32.partialorder %v129, %v652
    %vm676 = vcmp.eq.f32.partialorder %v130, %v652
    %vm677 = vcmp.eq.f32.partialorder %v131, %v652
    %vm678 = vcmp.eq.f32.partialorder %v132, %v652
    %vm679 = vcmp.eq.f32.partialorder %v133, %v652
    %vm680 = vcmp.eq.f32.partialorder %v134, %v652
    %vm681 = vcmp.eq.f32.partialorder %v135, %v652
    %vm682 = vcmp.eq.f32.partialorder %v136, %v652
    %vm683 = vcmp.eq.f32.partialorder %v137, %v652
    %vm684 = vcmp.eq.f32.partialorder %v138, %v652
    %vm685 = vcmp.eq.f32.partialorder %v139, %v652
    %v686 = vsel %vm653, 1.0, %v619
    %v687 = vsel %vm654, 1.0, %v620
    %v688 = vsel %vm655, 1.0, %v621
    %v689 = vsel %vm656, 1.0, %v622
    %v690 = vsel %vm657, 1.0, %v623
    %v691 = vsel %vm658, 1.0, %v624
    %v692 = vsel %vm659, 1.0, %v625
    %v693 = vsel %vm660, 1.0, %v626
    %v694 = vsel %vm661, 1.0, %v627
    %v695 = vsel %vm662, 1.0, %v628
    %v696 = vsel %vm663, 1.0, %v629
    %v697 = vsel %vm664, 1.0, %v630
    %v698 = vsel %vm665, 1.0, %v631
    %v699 = vsel %vm666, 1.0, %v632
    %v700 = vsel %vm667, 1.0, %v633
    %v701 = vsel %vm668, 1.0, %v634
    %v702 = vsel %vm669, 1.0, %v635
    %v703 = vsel %vm670, 1.0, %v636
    %v704 = vsel %vm671, 1.0, %v637
    %v705 = vsel %vm672, 1.0, %v638
    %v706 = vsel %vm673, 1.0, %v639
    %v707 = vsel %vm674, 1.0, %v640
    %v708 = vsel %vm675, 1.0, %v641
    %v709 = vsel %vm676, 1.0, %v642
    %v710 = vsel %vm677, 1.0, %v643
    %v711 = vsel %vm678, 1.0, %v644
    %v712 = vsel %vm679, 1.0, %v645
    %v713 = vsel %vm680, 1.0, %v646
    %v714 = vsel %vm681, 1.0, %v647
    %v715 = vsel %vm682, 1.0, %v648
    %v716 = vsel %vm683, 1.0, %v649
    %v717 = vsel %vm684, 1.0, %v650
    %v718 = vsel %vm685, 1.0, %v651
    %v719 = vperm.slane %v182, 0
    %vm720 = vcmp.eq.f32.partialorder %v27, %v719
    %vm721 = vcmp.eq.f32.partialorder %v28, %v719
    %vm722 = vcmp.eq.f32.partialorder %v109, %v719
    %vm723 = vcmp.eq.f32.partialorder %v110, %v719
    %vm724 = vcmp.eq.f32.partialorder %v111, %v719
    %vm725 = vcmp.eq.f32.partialorder %v112, %v719
    %vm726 = vcmp.eq.f32.partialorder %v113, %v719
    %vm727 = vcmp.eq.f32.partialorder %v114, %v719
    %vm728 = vcmp.eq.f32.partialorder %v115, %v719
    %vm729 = vcmp.eq.f32.partialorder %v116, %v719
    %vm730 = vcmp.eq.f32.partialorder %v117, %v719
    %vm731 = vcmp.eq.f32.partialorder %v118, %v719
    %vm732 = vcmp.eq.f32.partialorder %v119, %v719
    %vm733 = vcmp.eq.f32.partialorder %v120, %v719
    %vm734 = vcmp.eq.f32.partialorder %v121, %v719
    %vm735 = vcmp.eq.f32.partialorder %v122, %v719
    %vm736 = vcmp.eq.f32.partialorder %v123, %v719
    %vm737 = vcmp.eq.f32.partialorder %v124, %v719
    %vm738 = vcmp.eq.f32.partialorder %v125, %v719
    %vm739 = vcmp.eq.f32.partialorder %v126, %v719
    %vm740 = vcmp.eq.f32.partialorder %v127, %v719
    %vm741 = vcmp.eq.f32.partialorder %v128, %v719
    %vm742 = vcmp.eq.f32.partialorder %v129, %v719
    %vm743 = vcmp.eq.f32.partialorder %v130, %v719
    %vm744 = vcmp.eq.f32.partialorder %v131, %v719
    %vm745 = vcmp.eq.f32.partialorder %v132, %v719
    %vm746 = vcmp.eq.f32.partialorder %v133, %v719
    %vm747 = vcmp.eq.f32.partialorder %v134, %v719
    %vm748 = vcmp.eq.f32.partialorder %v135, %v719
    %vm749 = vcmp.eq.f32.partialorder %v136, %v719
    %vm750 = vcmp.eq.f32.partialorder %v137, %v719
    %vm751 = vcmp.eq.f32.partialorder %v138, %v719
    %vm752 = vcmp.eq.f32.partialorder %v139, %v719
    %v753 = vsel %vm720, 1.0, %v686
    %v754 = vsel %vm721, 1.0, %v687
    %v755 = vsel %vm722, 1.0, %v688
    %v756 = vsel %vm723, 1.0, %v689
    %v757 = vsel %vm724, 1.0, %v690
    %v758 = vsel %vm725, 1.0, %v691
    %v759 = vsel %vm726, 1.0, %v692
    %v760 = vsel %vm727, 1.0, %v693
    %v761 = vsel %vm728, 1.0, %v694
    %v762 = vsel %vm729, 1.0, %v695
    %v763 = vsel %vm730, 1.0, %v696
    %v764 = vsel %vm731, 1.0, %v697
    %v765 = vsel %vm732, 1.0, %v698
    %v766 = vsel %vm733, 1.0, %v699
    %v767 = vsel %vm734, 1.0, %v700
    %v768 = vsel %vm735, 1.0, %v701
    %v769 = vsel %vm736, 1.0, %v702
    %v770 = vsel %vm737, 1.0, %v703
    %v771 = vsel %vm738, 1.0, %v704
    %v772 = vsel %vm739, 1.0, %v705
    %v773 = vsel %vm740, 1.0, %v706
    %v774 = vsel %vm741, 1.0, %v707
    %v775 = vsel %vm742, 1.0, %v708
    %v776 = vsel %vm743, 1.0, %v709
    %v777 = vsel %vm744, 1.0, %v710
    %v778 = vsel %vm745, 1.0, %v711
    %v779 = vsel %vm746, 1.0, %v712
    %v780 = vsel %vm747, 1.0, %v713
    %v781 = vsel %vm748, 1.0, %v714
    %v782 = vsel %vm749, 1.0, %v715
    %v783 = vsel %vm750, 1.0, %v716
    %v784 = vsel %vm751, 1.0, %v717
    %v785 = vsel %vm752, 1.0, %v718
    %v786 = vperm.slane %v182, 1
    %vm787 = vcmp.eq.f32.partialorder %v27, %v786
    %vm788 = vcmp.eq.f32.partialorder %v28, %v786
    %vm789 = vcmp.eq.f32.partialorder %v109, %v786
    %vm790 = vcmp.eq.f32.partialorder %v110, %v786
    %vm791 = vcmp.eq.f32.partialorder %v111, %v786
    %vm792 = vcmp.eq.f32.partialorder %v112, %v786
    %vm793 = vcmp.eq.f32.partialorder %v113, %v786
    %vm794 = vcmp.eq.f32.partialorder %v114, %v786
    %vm795 = vcmp.eq.f32.partialorder %v115, %v786
    %vm796 = vcmp.eq.f32.partialorder %v116, %v786
    %vm797 = vcmp.eq.f32.partialorder %v117, %v786
    %vm798 = vcmp.eq.f32.partialorder %v118, %v786
    %vm799 = vcmp.eq.f32.partialorder %v119, %v786
    %vm800 = vcmp.eq.f32.partialorder %v120, %v786
    %vm801 = vcmp.eq.f32.partialorder %v121, %v786
    %vm802 = vcmp.eq.f32.partialorder %v122, %v786
    %vm803 = vcmp.eq.f32.partialorder %v123, %v786
    %vm804 = vcmp.eq.f32.partialorder %v124, %v786
    %vm805 = vcmp.eq.f32.partialorder %v125, %v786
    %vm806 = vcmp.eq.f32.partialorder %v126, %v786
    %vm807 = vcmp.eq.f32.partialorder %v127, %v786
    %vm808 = vcmp.eq.f32.partialorder %v128, %v786
    %vm809 = vcmp.eq.f32.partialorder %v129, %v786
    %vm810 = vcmp.eq.f32.partialorder %v130, %v786
    %vm811 = vcmp.eq.f32.partialorder %v131, %v786
    %vm812 = vcmp.eq.f32.partialorder %v132, %v786
    %vm813 = vcmp.eq.f32.partialorder %v133, %v786
    %vm814 = vcmp.eq.f32.partialorder %v134, %v786
    %vm815 = vcmp.eq.f32.partialorder %v135, %v786
    %vm816 = vcmp.eq.f32.partialorder %v136, %v786
    %vm817 = vcmp.eq.f32.partialorder %v137, %v786
    %vm818 = vcmp.eq.f32.partialorder %v138, %v786
    %vm819 = vcmp.eq.f32.partialorder %v139, %v786
    %v820 = vsel %vm787, 1.0, %v753
    %v821 = vsel %vm788, 1.0, %v754
    %v822 = vsel %vm789, 1.0, %v755
    %v823 = vsel %vm790, 1.0, %v756
    %v824 = vsel %vm791, 1.0, %v757
    %v825 = vsel %vm792, 1.0, %v758
    %v826 = vsel %vm793, 1.0, %v759
    %v827 = vsel %vm794, 1.0, %v760
    %v828 = vsel %vm795, 1.0, %v761
    %v829 = vsel %vm796, 1.0, %v762
    %v830 = vsel %vm797, 1.0, %v763
    %v831 = vsel %vm798, 1.0, %v764
    %v832 = vsel %vm799, 1.0, %v765
    %v833 = vsel %vm800, 1.0, %v766
    %v834 = vsel %vm801, 1.0, %v767
    %v835 = vsel %vm802, 1.0, %v768
    %v836 = vsel %vm803, 1.0, %v769
    %v837 = vsel %vm804, 1.0, %v770
    %v838 = vsel %vm805, 1.0, %v771
    %v839 = vsel %vm806, 1.0, %v772
    %v840 = vsel %vm807, 1.0, %v773
    %v841 = vsel %vm808, 1.0, %v774
    %v842 = vsel %vm809, 1.0, %v775
    %v843 = vsel %vm810, 1.0, %v776
    %v844 = vsel %vm811, 1.0, %v777
    %v845 = vsel %vm812, 1.0, %v778
    %v846 = vsel %vm813, 1.0, %v779
    %v847 = vsel %vm814, 1.0, %v780
    %v848 = vsel %vm815, 1.0, %v781
    %v849 = vsel %vm816, 1.0, %v782
    %v850 = vsel %vm817, 1.0, %v783
    %v851 = vsel %vm818, 1.0, %v784
    %v852 = vsel %vm819, 1.0, %v785
    %v853 = vperm.slane %v182, 2
    %vm854 = vcmp.eq.f32.partialorder %v27, %v853
    %vm855 = vcmp.eq.f32.partialorder %v28, %v853
    %vm856 = vcmp.eq.f32.partialorder %v109, %v853
    %vm857 = vcmp.eq.f32.partialorder %v110, %v853
    %vm858 = vcmp.eq.f32.partialorder %v111, %v853
    %vm859 = vcmp.eq.f32.partialorder %v112, %v853
    %vm860 = vcmp.eq.f32.partialorder %v113, %v853
    %vm861 = vcmp.eq.f32.partialorder %v114, %v853
    %vm862 = vcmp.eq.f32.partialorder %v115, %v853
    %vm863 = vcmp.eq.f32.partialorder %v116, %v853
    %vm864 = vcmp.eq.f32.partialorder %v117, %v853
    %vm865 = vcmp.eq.f32.partialorder %v118, %v853
    %vm866 = vcmp.eq.f32.partialorder %v119, %v853
    %vm867 = vcmp.eq.f32.partialorder %v120, %v853
    %vm868 = vcmp.eq.f32.partialorder %v121, %v853
    %vm869 = vcmp.eq.f32.partialorder %v122, %v853
    %vm870 = vcmp.eq.f32.partialorder %v123, %v853
    %vm871 = vcmp.eq.f32.partialorder %v124, %v853
    %vm872 = vcmp.eq.f32.partialorder %v125, %v853
    %vm873 = vcmp.eq.f32.partialorder %v126, %v853
    %vm874 = vcmp.eq.f32.partialorder %v127, %v853
    %vm875 = vcmp.eq.f32.partialorder %v128, %v853
    %vm876 = vcmp.eq.f32.partialorder %v129, %v853
    %vm877 = vcmp.eq.f32.partialorder %v130, %v853
    %vm878 = vcmp.eq.f32.partialorder %v131, %v853
    %vm879 = vcmp.eq.f32.partialorder %v132, %v853
    %vm880 = vcmp.eq.f32.partialorder %v133, %v853
    %vm881 = vcmp.eq.f32.partialorder %v134, %v853
    %vm882 = vcmp.eq.f32.partialorder %v135, %v853
    %vm883 = vcmp.eq.f32.partialorder %v136, %v853
    %vm884 = vcmp.eq.f32.partialorder %v137, %v853
    %vm885 = vcmp.eq.f32.partialorder %v138, %v853
    %vm886 = vcmp.eq.f32.partialorder %v139, %v853
    %v887 = vsel %vm854, 1.0, %v820
    %v888 = vsel %vm855, 1.0, %v821
    %v889 = vsel %vm856, 1.0, %v822
    %v890 = vsel %vm857, 1.0, %v823
    %v891 = vsel %vm858, 1.0, %v824
    %v892 = vsel %vm859, 1.0, %v825
    %v893 = vsel %vm860, 1.0, %v826
    %v894 = vsel %vm861, 1.0, %v827
    %v895 = vsel %vm862, 1.0, %v828
    %v896 = vsel %vm863, 1.0, %v829
    %v897 = vsel %vm864, 1.0, %v830
    %v898 = vsel %vm865, 1.0, %v831
    %v899 = vsel %vm866, 1.0, %v832
    %v900 = vsel %vm867, 1.0, %v833
    %v901 = vsel %vm868, 1.0, %v834
    %v902 = vsel %vm869, 1.0, %v835
    %v903 = vsel %vm870, 1.0, %v836
    %v904 = vsel %vm871, 1.0, %v837
    %v905 = vsel %vm872, 1.0, %v838
    %v906 = vsel %vm873, 1.0, %v839
    %v907 = vsel %vm874, 1.0, %v840
    %v908 = vsel %vm875, 1.0, %v841
    %v909 = vsel %vm876, 1.0, %v842
    %v910 = vsel %vm877, 1.0, %v843
    %v911 = vsel %vm878, 1.0, %v844
    %v912 = vsel %vm879, 1.0, %v845
    %v913 = vsel %vm880, 1.0, %v846
    %v914 = vsel %vm881, 1.0, %v847
    %v915 = vsel %vm882, 1.0, %v848
    %v916 = vsel %vm883, 1.0, %v849
    %v917 = vsel %vm884, 1.0, %v850
    %v918 = vsel %vm885, 1.0, %v851
    %v919 = vsel %vm886, 1.0, %v852
    %v920 = vperm.slane %v182, 3
    %vm921 = vcmp.eq.f32.partialorder %v27, %v920
    %vm922 = vcmp.eq.f32.partialorder %v28, %v920
    %vm923 = vcmp.eq.f32.partialorder %v109, %v920
    %vm924 = vcmp.eq.f32.partialorder %v110, %v920
    %vm925 = vcmp.eq.f32.partialorder %v111, %v920
    %vm926 = vcmp.eq.f32.partialorder %v112, %v920
    %vm927 = vcmp.eq.f32.partialorder %v113, %v920
    %vm928 = vcmp.eq.f32.partialorder %v114, %v920
    %vm929 = vcmp.eq.f32.partialorder %v115, %v920
    %vm930 = vcmp.eq.f32.partialorder %v116, %v920
    %vm931 = vcmp.eq.f32.partialorder %v117, %v920
    %vm932 = vcmp.eq.f32.partialorder %v118, %v920
    %vm933 = vcmp.eq.f32.partialorder %v119, %v920
    %vm934 = vcmp.eq.f32.partialorder %v120, %v920
    %vm935 = vcmp.eq.f32.partialorder %v121, %v920
    %vm936 = vcmp.eq.f32.partialorder %v122, %v920
    %vm937 = vcmp.eq.f32.partialorder %v123, %v920
    %vm938 = vcmp.eq.f32.partialorder %v124, %v920
    %vm939 = vcmp.eq.f32.partialorder %v125, %v920
    %vm940 = vcmp.eq.f32.partialorder %v126, %v920
    %vm941 = vcmp.eq.f32.partialorder %v127, %v920
    %vm942 = vcmp.eq.f32.partialorder %v128, %v920
    %vm943 = vcmp.eq.f32.partialorder %v129, %v920
    %vm944 = vcmp.eq.f32.partialorder %v130, %v920
    %vm945 = vcmp.eq.f32.partialorder %v131, %v920
    %vm946 = vcmp.eq.f32.partialorder %v132, %v920
    %vm947 = vcmp.eq.f32.partialorder %v133, %v920
    %vm948 = vcmp.eq.f32.partialorder %v134, %v920
    %vm949 = vcmp.eq.f32.partialorder %v135, %v920
    %vm950 = vcmp.eq.f32.partialorder %v136, %v920
    %vm951 = vcmp.eq.f32.partialorder %v137, %v920
    %vm952 = vcmp.eq.f32.partialorder %v138, %v920
    %vm953 = vcmp.eq.f32.partialorder %v139, %v920
    %v954 = vsel %vm921, 1.0, %v887
    %v955 = vsel %vm922, 1.0, %v888
    %v956 = vsel %vm923, 1.0, %v889
    %v957 = vsel %vm924, 1.0, %v890
    %v958 = vsel %vm925, 1.0, %v891
    %v959 = vsel %vm926, 1.0, %v892
    %v960 = vsel %vm927, 1.0, %v893
    %v961 = vsel %vm928, 1.0, %v894
    %v962 = vsel %vm929, 1.0, %v895
    %v963 = vsel %vm930, 1.0, %v896
    %v964 = vsel %vm931, 1.0, %v897
    %v965 = vsel %vm932, 1.0, %v898
    %v966 = vsel %vm933, 1.0, %v899
    %v967 = vsel %vm934, 1.0, %v900
    %v968 = vsel %vm935, 1.0, %v901
    %v969 = vsel %vm936, 1.0, %v902
    %v970 = vsel %vm937, 1.0, %v903
    %v971 = vsel %vm938, 1.0, %v904
    %v972 = vsel %vm939, 1.0, %v905
    %v973 = vsel %vm940, 1.0, %v906
    %v974 = vsel %vm941, 1.0, %v907
    %v975 = vsel %vm942, 1.0, %v908
    %v976 = vsel %vm943, 1.0, %v909
    %v977 = vsel %vm944, 1.0, %v910
    %v978 = vsel %vm945, 1.0, %v911
    %v979 = vsel %vm946, 1.0, %v912
    %v980 = vsel %vm947, 1.0, %v913
    %v981 = vsel %vm948, 1.0, %v914
    %v982 = vsel %vm949, 1.0, %v915
    %v983 = vsel %vm950, 1.0, %v916
    %v984 = vsel %vm951, 1.0, %v917
    %v985 = vsel %vm952, 1.0, %v918
    %v986 = vsel %vm953, 1.0, %v919
    %v987 = vperm.slane %v182, 4
    %vm988 = vcmp.eq.f32.partialorder %v27, %v987
    %vm989 = vcmp.eq.f32.partialorder %v28, %v987
    %vm990 = vcmp.eq.f32.partialorder %v109, %v987
    %vm991 = vcmp.eq.f32.partialorder %v110, %v987
    %vm992 = vcmp.eq.f32.partialorder %v111, %v987
    %vm993 = vcmp.eq.f32.partialorder %v112, %v987
    %vm994 = vcmp.eq.f32.partialorder %v113, %v987
    %vm995 = vcmp.eq.f32.partialorder %v114, %v987
    %vm996 = vcmp.eq.f32.partialorder %v115, %v987
    %vm997 = vcmp.eq.f32.partialorder %v116, %v987
    %vm998 = vcmp.eq.f32.partialorder %v117, %v987
    %vm999 = vcmp.eq.f32.partialorder %v118, %v987
    %vm1000 = vcmp.eq.f32.partialorder %v119, %v987
    %vm1001 = vcmp.eq.f32.partialorder %v120, %v987
    %vm1002 = vcmp.eq.f32.partialorder %v121, %v987
    %vm1003 = vcmp.eq.f32.partialorder %v122, %v987
    %vm1004 = vcmp.eq.f32.partialorder %v123, %v987
    %vm1005 = vcmp.eq.f32.partialorder %v124, %v987
    %vm1006 = vcmp.eq.f32.partialorder %v125, %v987
    %vm1007 = vcmp.eq.f32.partialorder %v126, %v987
    %vm1008 = vcmp.eq.f32.partialorder %v127, %v987
    %vm1009 = vcmp.eq.f32.partialorder %v128, %v987
    %vm1010 = vcmp.eq.f32.partialorder %v129, %v987
    %vm1011 = vcmp.eq.f32.partialorder %v130, %v987
    %vm1012 = vcmp.eq.f32.partialorder %v131, %v987
    %vm1013 = vcmp.eq.f32.partialorder %v132, %v987
    %vm1014 = vcmp.eq.f32.partialorder %v133, %v987
    %vm1015 = vcmp.eq.f32.partialorder %v134, %v987
    %vm1016 = vcmp.eq.f32.partialorder %v135, %v987
    %vm1017 = vcmp.eq.f32.partialorder %v136, %v987
    %vm1018 = vcmp.eq.f32.partialorder %v137, %v987
    %vm1019 = vcmp.eq.f32.partialorder %v138, %v987
    %vm1020 = vcmp.eq.f32.partialorder %v139, %v987
    %v1021 = vsel %vm988, 1.0, %v954
    %v1022 = vsel %vm989, 1.0, %v955
    %v1023 = vsel %vm990, 1.0, %v956
    %v1024 = vsel %vm991, 1.0, %v957
    %v1025 = vsel %vm992, 1.0, %v958
    %v1026 = vsel %vm993, 1.0, %v959
    %v1027 = vsel %vm994, 1.0, %v960
    %v1028 = vsel %vm995, 1.0, %v961
    %v1029 = vsel %vm996, 1.0, %v962
    %v1030 = vsel %vm997, 1.0, %v963
    %v1031 = vsel %vm998, 1.0, %v964
    %v1032 = vsel %vm999, 1.0, %v965
    %v1033 = vsel %vm1000, 1.0, %v966
    %v1034 = vsel %vm1001, 1.0, %v967
    %v1035 = vsel %vm1002, 1.0, %v968
    %v1036 = vsel %vm1003, 1.0, %v969
    %v1037 = vsel %vm1004, 1.0, %v970
    %v1038 = vsel %vm1005, 1.0, %v971
    %v1039 = vsel %vm1006, 1.0, %v972
    %v1040 = vsel %vm1007, 1.0, %v973
    %v1041 = vsel %vm1008, 1.0, %v974
    %v1042 = vsel %vm1009, 1.0, %v975
    %v1043 = vsel %vm1010, 1.0, %v976
    %v1044 = vsel %vm1011, 1.0, %v977
    %v1045 = vsel %vm1012, 1.0, %v978
    %v1046 = vsel %vm1013, 1.0, %v979
    %v1047 = vsel %vm1014, 1.0, %v980
    %v1048 = vsel %vm1015, 1.0, %v981
    %v1049 = vsel %vm1016, 1.0, %v982
    %v1050 = vsel %vm1017, 1.0, %v983
    %v1051 = vsel %vm1018, 1.0, %v984
    %v1052 = vsel %vm1019, 1.0, %v985
    %v1053 = vsel %vm1020, 1.0, %v986
    %v1054 = vperm.slane %v182, 5
    %vm1055 = vcmp.eq.f32.partialorder %v27, %v1054
    %vm1056 = vcmp.eq.f32.partialorder %v28, %v1054
    %vm1057 = vcmp.eq.f32.partialorder %v109, %v1054
    %vm1058 = vcmp.eq.f32.partialorder %v110, %v1054
    %vm1059 = vcmp.eq.f32.partialorder %v111, %v1054
    %vm1060 = vcmp.eq.f32.partialorder %v112, %v1054
    %vm1061 = vcmp.eq.f32.partialorder %v113, %v1054
    %vm1062 = vcmp.eq.f32.partialorder %v114, %v1054
    %vm1063 = vcmp.eq.f32.partialorder %v115, %v1054
    %vm1064 = vcmp.eq.f32.partialorder %v116, %v1054
    %vm1065 = vcmp.eq.f32.partialorder %v117, %v1054
    %vm1066 = vcmp.eq.f32.partialorder %v118, %v1054
    %vm1067 = vcmp.eq.f32.partialorder %v119, %v1054
    %vm1068 = vcmp.eq.f32.partialorder %v120, %v1054
    %vm1069 = vcmp.eq.f32.partialorder %v121, %v1054
    %vm1070 = vcmp.eq.f32.partialorder %v122, %v1054
    %vm1071 = vcmp.eq.f32.partialorder %v123, %v1054
    %vm1072 = vcmp.eq.f32.partialorder %v124, %v1054
    %vm1073 = vcmp.eq.f32.partialorder %v125, %v1054
    %vm1074 = vcmp.eq.f32.partialorder %v126, %v1054
    %vm1075 = vcmp.eq.f32.partialorder %v127, %v1054
    %vm1076 = vcmp.eq.f32.partialorder %v128, %v1054
    %vm1077 = vcmp.eq.f32.partialorder %v129, %v1054
    %vm1078 = vcmp.eq.f32.partialorder %v130, %v1054
    %vm1079 = vcmp.eq.f32.partialorder %v131, %v1054
    %vm1080 = vcmp.eq.f32.partialorder %v132, %v1054
    %vm1081 = vcmp.eq.f32.partialorder %v133, %v1054
    %vm1082 = vcmp.eq.f32.partialorder %v134, %v1054
    %vm1083 = vcmp.eq.f32.partialorder %v135, %v1054
    %vm1084 = vcmp.eq.f32.partialorder %v136, %v1054
    %vm1085 = vcmp.eq.f32.partialorder %v137, %v1054
    %vm1086 = vcmp.eq.f32.partialorder %v138, %v1054
    %vm1087 = vcmp.eq.f32.partialorder %v139, %v1054
    %v1088 = vsel %vm1055, 1.0, %v1021
    %v1089 = vsel %vm1056, 1.0, %v1022
    %v1090 = vsel %vm1057, 1.0, %v1023
    %v1091 = vsel %vm1058, 1.0, %v1024
    %v1092 = vsel %vm1059, 1.0, %v1025
    %v1093 = vsel %vm1060, 1.0, %v1026
    %v1094 = vsel %vm1061, 1.0, %v1027
    %v1095 = vsel %vm1062, 1.0, %v1028
    %v1096 = vsel %vm1063, 1.0, %v1029
    %v1097 = vsel %vm1064, 1.0, %v1030
    %v1098 = vsel %vm1065, 1.0, %v1031
    %v1099 = vsel %vm1066, 1.0, %v1032
    %v1100 = vsel %vm1067, 1.0, %v1033
    %v1101 = vsel %vm1068, 1.0, %v1034
    %v1102 = vsel %vm1069, 1.0, %v1035
    %v1103 = vsel %vm1070, 1.0, %v1036
    %v1104 = vsel %vm1071, 1.0, %v1037
    %v1105 = vsel %vm1072, 1.0, %v1038
    %v1106 = vsel %vm1073, 1.0, %v1039
    %v1107 = vsel %vm1074, 1.0, %v1040
    %v1108 = vsel %vm1075, 1.0, %v1041
    %v1109 = vsel %vm1076, 1.0, %v1042
    %v1110 = vsel %vm1077, 1.0, %v1043
    %v1111 = vsel %vm1078, 1.0, %v1044
    %v1112 = vsel %vm1079, 1.0, %v1045
    %v1113 = vsel %vm1080, 1.0, %v1046
    %v1114 = vsel %vm1081, 1.0, %v1047
    %v1115 = vsel %vm1082, 1.0, %v1048
    %v1116 = vsel %vm1083, 1.0, %v1049
    %v1117 = vsel %vm1084, 1.0, %v1050
    %v1118 = vsel %vm1085, 1.0, %v1051
    %v1119 = vsel %vm1086, 1.0, %v1052
    %v1120 = vsel %vm1087, 1.0, %v1053
    %v1121 = vperm.slane %v182, 6
    %vm1122 = vcmp.eq.f32.partialorder %v27, %v1121
    %vm1123 = vcmp.eq.f32.partialorder %v28, %v1121
    %vm1124 = vcmp.eq.f32.partialorder %v109, %v1121
    %vm1125 = vcmp.eq.f32.partialorder %v110, %v1121
    %vm1126 = vcmp.eq.f32.partialorder %v111, %v1121
    %vm1127 = vcmp.eq.f32.partialorder %v112, %v1121
    %vm1128 = vcmp.eq.f32.partialorder %v113, %v1121
    %vm1129 = vcmp.eq.f32.partialorder %v114, %v1121
    %vm1130 = vcmp.eq.f32.partialorder %v115, %v1121
    %vm1131 = vcmp.eq.f32.partialorder %v116, %v1121
    %vm1132 = vcmp.eq.f32.partialorder %v117, %v1121
    %vm1133 = vcmp.eq.f32.partialorder %v118, %v1121
    %vm1134 = vcmp.eq.f32.partialorder %v119, %v1121
    %vm1135 = vcmp.eq.f32.partialorder %v120, %v1121
    %vm1136 = vcmp.eq.f32.partialorder %v121, %v1121
    %vm1137 = vcmp.eq.f32.partialorder %v122, %v1121
    %vm1138 = vcmp.eq.f32.partialorder %v123, %v1121
    %vm1139 = vcmp.eq.f32.partialorder %v124, %v1121
    %vm1140 = vcmp.eq.f32.partialorder %v125, %v1121
    %vm1141 = vcmp.eq.f32.partialorder %v126, %v1121
    %vm1142 = vcmp.eq.f32.partialorder %v127, %v1121
    %vm1143 = vcmp.eq.f32.partialorder %v128, %v1121
    %vm1144 = vcmp.eq.f32.partialorder %v129, %v1121
    %vm1145 = vcmp.eq.f32.partialorder %v130, %v1121
    %vm1146 = vcmp.eq.f32.partialorder %v131, %v1121
    %vm1147 = vcmp.eq.f32.partialorder %v132, %v1121
    %vm1148 = vcmp.eq.f32.partialorder %v133, %v1121
    %vm1149 = vcmp.eq.f32.partialorder %v134, %v1121
    %vm1150 = vcmp.eq.f32.partialorder %v135, %v1121
    %vm1151 = vcmp.eq.f32.partialorder %v136, %v1121
    %vm1152 = vcmp.eq.f32.partialorder %v137, %v1121
    %vm1153 = vcmp.eq.f32.partialorder %v138, %v1121
    %vm1154 = vcmp.eq.f32.partialorder %v139, %v1121
    %v1155 = vsel %vm1122, 1.0, %v1088
    %v1156 = vsel %vm1123, 1.0, %v1089
    %v1157 = vsel %vm1124, 1.0, %v1090
    %v1158 = vsel %vm1125, 1.0, %v1091
    %v1159 = vsel %vm1126, 1.0, %v1092
    %v1160 = vsel %vm1127, 1.0, %v1093
    %v1161 = vsel %vm1128, 1.0, %v1094
    %v1162 = vsel %vm1129, 1.0, %v1095
    %v1163 = vsel %vm1130, 1.0, %v1096
    %v1164 = vsel %vm1131, 1.0, %v1097
    %v1165 = vsel %vm1132, 1.0, %v1098
    %v1166 = vsel %vm1133, 1.0, %v1099
    %v1167 = vsel %vm1134, 1.0, %v1100
    %v1168 = vsel %vm1135, 1.0, %v1101
    %v1169 = vsel %vm1136, 1.0, %v1102
    %v1170 = vsel %vm1137, 1.0, %v1103
    %v1171 = vsel %vm1138, 1.0, %v1104
    %v1172 = vsel %vm1139, 1.0, %v1105
    %v1173 = vsel %vm1140, 1.0, %v1106
    %v1174 = vsel %vm1141, 1.0, %v1107
    %v1175 = vsel %vm1142, 1.0, %v1108
    %v1176 = vsel %vm1143, 1.0, %v1109
    %v1177 = vsel %vm1144, 1.0, %v1110
    %v1178 = vsel %vm1145, 1.0, %v1111
    %v1179 = vsel %vm1146, 1.0, %v1112
    %v1180 = vsel %vm1147, 1.0, %v1113
    %v1181 = vsel %vm1148, 1.0, %v1114
    %v1182 = vsel %vm1149, 1.0, %v1115
    %v1183 = vsel %vm1150, 1.0, %v1116
    %v1184 = vsel %vm1151, 1.0, %v1117
    %v1185 = vsel %vm1152, 1.0, %v1118
    %v1186 = vsel %vm1153, 1.0, %v1119
    %v1187 = vsel %vm1154, 1.0, %v1120
    %v1188 = vperm.slane %v182, 7
    %vm1189 = vcmp.eq.f32.partialorder %v27, %v1188
    %vm1190 = vcmp.eq.f32.partialorder %v28, %v1188
    %vm1191 = vcmp.eq.f32.partialorder %v109, %v1188
    %vm1192 = vcmp.eq.f32.partialorder %v110, %v1188
    %vm1193 = vcmp.eq.f32.partialorder %v111, %v1188
    %vm1194 = vcmp.eq.f32.partialorder %v112, %v1188
    %vm1195 = vcmp.eq.f32.partialorder %v113, %v1188
    %vm1196 = vcmp.eq.f32.partialorder %v114, %v1188
    %vm1197 = vcmp.eq.f32.partialorder %v115, %v1188
    %vm1198 = vcmp.eq.f32.partialorder %v116, %v1188
    %vm1199 = vcmp.eq.f32.partialorder %v117, %v1188
    %vm1200 = vcmp.eq.f32.partialorder %v118, %v1188
    %vm1201 = vcmp.eq.f32.partialorder %v119, %v1188
    %vm1202 = vcmp.eq.f32.partialorder %v120, %v1188
    %vm1203 = vcmp.eq.f32.partialorder %v121, %v1188
    %vm1204 = vcmp.eq.f32.partialorder %v122, %v1188
    %vm1205 = vcmp.eq.f32.partialorder %v123, %v1188
    %vm1206 = vcmp.eq.f32.partialorder %v124, %v1188
    %vm1207 = vcmp.eq.f32.partialorder %v125, %v1188
    %vm1208 = vcmp.eq.f32.partialorder %v126, %v1188
    %vm1209 = vcmp.eq.f32.partialorder %v127, %v1188
    %vm1210 = vcmp.eq.f32.partialorder %v128, %v1188
    %vm1211 = vcmp.eq.f32.partialorder %v129, %v1188
    %vm1212 = vcmp.eq.f32.partialorder %v130, %v1188
    %vm1213 = vcmp.eq.f32.partialorder %v131, %v1188
    %vm1214 = vcmp.eq.f32.partialorder %v132, %v1188
    %vm1215 = vcmp.eq.f32.partialorder %v133, %v1188
    %vm1216 = vcmp.eq.f32.partialorder %v134, %v1188
    %vm1217 = vcmp.eq.f32.partialorder %v135, %v1188
    %vm1218 = vcmp.eq.f32.partialorder %v136, %v1188
    %vm1219 = vcmp.eq.f32.partialorder %v137, %v1188
    %vm1220 = vcmp.eq.f32.partialorder %v138, %v1188
    %vm1221 = vcmp.eq.f32.partialorder %v139, %v1188
    %v1222 = vsel %vm1189, 1.0, %v1155
    %v1223 = vsel %vm1190, 1.0, %v1156
    %v1224 = vsel %vm1191, 1.0, %v1157
    %v1225 = vsel %vm1192, 1.0, %v1158
    %v1226 = vsel %vm1193, 1.0, %v1159
    %v1227 = vsel %vm1194, 1.0, %v1160
    %v1228 = vsel %vm1195, 1.0, %v1161
    %v1229 = vsel %vm1196, 1.0, %v1162
    %v1230 = vsel %vm1197, 1.0, %v1163
    %v1231 = vsel %vm1198, 1.0, %v1164
    %v1232 = vsel %vm1199, 1.0, %v1165
    %v1233 = vsel %vm1200, 1.0, %v1166
    %v1234 = vsel %vm1201, 1.0, %v1167
    %v1235 = vsel %vm1202, 1.0, %v1168
    %v1236 = vsel %vm1203, 1.0, %v1169
    %v1237 = vsel %vm1204, 1.0, %v1170
    %v1238 = vsel %vm1205, 1.0, %v1171
    %v1239 = vsel %vm1206, 1.0, %v1172
    %v1240 = vsel %vm1207, 1.0, %v1173
    %v1241 = vsel %vm1208, 1.0, %v1174
    %v1242 = vsel %vm1209, 1.0, %v1175
    %v1243 = vsel %vm1210, 1.0, %v1176
    %v1244 = vsel %vm1211, 1.0, %v1177
    %v1245 = vsel %vm1212, 1.0, %v1178
    %v1246 = vsel %vm1213, 1.0, %v1179
    %v1247 = vsel %vm1214, 1.0, %v1180
    %v1248 = vsel %vm1215, 1.0, %v1181
    %v1249 = vsel %vm1216, 1.0, %v1182
    %v1250 = vsel %vm1217, 1.0, %v1183
    %v1251 = vsel %vm1218, 1.0, %v1184
    %v1252 = vsel %vm1219, 1.0, %v1185
    %v1253 = vsel %vm1220, 1.0, %v1186
    %v1254 = vsel %vm1221, 1.0, %v1187
    %1255 = vmax.xlane.f32.xlu0 %v1222
    %v1256 = vpop.xlane.xlu0 %1255
    %1257 = vmax.xlane.f32.xlu0 %v1223
    %v1258 = vpop.xlane.xlu0 %1257
    %1259 = vmax.xlane.f32.xlu0 %v1224
    %v1260 = vpop.xlane.xlu0 %1259
    %1261 = vmax.xlane.f32.xlu0 %v1225
    %v1262 = vpop.xlane.xlu0 %1261
    %1263 = vmax.xlane.f32.xlu0 %v1226
    %v1264 = vpop.xlane.xlu0 %1263
    %1265 = vmax.xlane.f32.xlu0 %v1227
    %v1266 = vpop.xlane.xlu0 %1265
    %1267 = vmax.xlane.f32.xlu0 %v1228
    %v1268 = vpop.xlane.xlu0 %1267
    %1269 = vmax.xlane.f32.xlu0 %v1229
    %v1270 = vpop.xlane.xlu0 %1269
    %1271 = vmax.xlane.f32.xlu0 %v1230
    %v1272 = vpop.xlane.xlu0 %1271
    %1273 = vmax.xlane.f32.xlu0 %v1231
    %v1274 = vpop.xlane.xlu0 %1273
    %1275 = vmax.xlane.f32.xlu0 %v1232
    %v1276 = vpop.xlane.xlu0 %1275
    %1277 = vmax.xlane.f32.xlu0 %v1233
    %v1278 = vpop.xlane.xlu0 %1277
    %1279 = vmax.xlane.f32.xlu0 %v1234
    %v1280 = vpop.xlane.xlu0 %1279
    %1281 = vmax.xlane.f32.xlu0 %v1235
    %v1282 = vpop.xlane.xlu0 %1281
    %1283 = vmax.xlane.f32.xlu0 %v1236
    %v1284 = vpop.xlane.xlu0 %1283
    %1285 = vmax.xlane.f32.xlu0 %v1237
    %v1286 = vpop.xlane.xlu0 %1285
    %1287 = vmax.xlane.f32.xlu0 %v1238
    %v1288 = vpop.xlane.xlu0 %1287
    %1289 = vmax.xlane.f32.xlu0 %v1239
    %v1290 = vpop.xlane.xlu0 %1289
    %1291 = vmax.xlane.f32.xlu0 %v1240
    %v1292 = vpop.xlane.xlu0 %1291
    %1293 = vmax.xlane.f32.xlu0 %v1241
    %v1294 = vpop.xlane.xlu0 %1293
    %1295 = vmax.xlane.f32.xlu0 %v1242
    %v1296 = vpop.xlane.xlu0 %1295
    %1297 = vmax.xlane.f32.xlu0 %v1243
    %v1298 = vpop.xlane.xlu0 %1297
    %1299 = vmax.xlane.f32.xlu0 %v1244
    %v1300 = vpop.xlane.xlu0 %1299
    %1301 = vmax.xlane.f32.xlu0 %v1245
    %v1302 = vpop.xlane.xlu0 %1301
    %1303 = vmax.xlane.f32.xlu0 %v1246
    %v1304 = vpop.xlane.xlu0 %1303
    %1305 = vmax.xlane.f32.xlu0 %v1247
    %v1306 = vpop.xlane.xlu0 %1305
    %1307 = vmax.xlane.f32.xlu0 %v1248
    %v1308 = vpop.xlane.xlu0 %1307
    %1309 = vmax.xlane.f32.xlu0 %v1249
    %v1310 = vpop.xlane.xlu0 %1309
    %1311 = vmax.xlane.f32.xlu0 %v1250
    %v1312 = vpop.xlane.xlu0 %1311
    %1313 = vmax.xlane.f32.xlu0 %v1251
    %v1314 = vpop.xlane.xlu0 %1313
    %1315 = vmax.xlane.f32.xlu0 %v1252
    %v1316 = vpop.xlane.xlu0 %1315
    %1317 = vmax.xlane.f32.xlu0 %v1253
    %v1318 = vpop.xlane.xlu0 %1317
    %1319 = vmax.xlane.f32.xlu0 %v1254
    %v1320 = vpop.xlane.xlu0 %1319
    %vm1321 = vcmask 7168
    %v1322 = vsel %vm1321, %v1256, 0.0
    %v1323 = vsel %vm1321, %v1258, 0.0
    %v1324 = vadd.f32 %v1322, %v1323
    %v1325 = vsel %vm1321, %v1260, 0.0
    %v1326 = vadd.f32 %v1324, %v1325
    %v1327 = vsel %vm1321, %v1262, 0.0
    %v1328 = vadd.f32 %v1326, %v1327
    %v1329 = vsel %vm1321, %v1264, 0.0
    %v1330 = vadd.f32 %v1328, %v1329
    %v1331 = vsel %vm1321, %v1266, 0.0
    %v1332 = vadd.f32 %v1330, %v1331
    %v1333 = vsel %vm1321, %v1268, 0.0
    %v1334 = vadd.f32 %v1332, %v1333
    %v1335 = vsel %vm1321, %v1270, 0.0
    %v1336 = vadd.f32 %v1334, %v1335
    %v1337 = vsel %vm1321, %v1272, 0.0
    %v1338 = vadd.f32 %v1336, %v1337
    %v1339 = vsel %vm1321, %v1274, 0.0
    %v1340 = vadd.f32 %v1338, %v1339
    %v1341 = vsel %vm1321, %v1276, 0.0
    %v1342 = vadd.f32 %v1340, %v1341
    %v1343 = vsel %vm1321, %v1278, 0.0
    %v1344 = vadd.f32 %v1342, %v1343
    %v1345 = vsel %vm1321, %v1280, 0.0
    %v1346 = vadd.f32 %v1344, %v1345
    %v1347 = vsel %vm1321, %v1282, 0.0
    %v1348 = vadd.f32 %v1346, %v1347
    %v1349 = vsel %vm1321, %v1284, 0.0
    %v1350 = vadd.f32 %v1348, %v1349
    %v1351 = vsel %vm1321, %v1286, 0.0
    %v1352 = vadd.f32 %v1350, %v1351
    %v1353 = vsel %vm1321, %v1288, 0.0
    %v1354 = vadd.f32 %v1352, %v1353
    %v1355 = vsel %vm1321, %v1290, 0.0
    %v1356 = vadd.f32 %v1354, %v1355
    %v1357 = vsel %vm1321, %v1292, 0.0
    %v1358 = vadd.f32 %v1356, %v1357
    %v1359 = vsel %vm1321, %v1294, 0.0
    %v1360 = vadd.f32 %v1358, %v1359
    %v1361 = vsel %vm1321, %v1296, 0.0
    %v1362 = vadd.f32 %v1360, %v1361
    %v1363 = vsel %vm1321, %v1298, 0.0
    %v1364 = vadd.f32 %v1362, %v1363
    %v1365 = vsel %vm1321, %v1300, 0.0
    %v1366 = vadd.f32 %v1364, %v1365
    %v1367 = vsel %vm1321, %v1302, 0.0
    %v1368 = vadd.f32 %v1366, %v1367
    %v1369 = vsel %vm1321, %v1304, 0.0
    %v1370 = vadd.f32 %v1368, %v1369
    %v1371 = vsel %vm1321, %v1306, 0.0
    %v1372 = vadd.f32 %v1370, %v1371
    %v1373 = vsel %vm1321, %v1308, 0.0
    %v1374 = vadd.f32 %v1372, %v1373
    %v1375 = vsel %vm1321, %v1310, 0.0
    %v1376 = vadd.f32 %v1374, %v1375
    %v1377 = vsel %vm1321, %v1312, 0.0
    %v1378 = vadd.f32 %v1376, %v1377
    %v1379 = vsel %vm1321, %v1314, 0.0
    %v1380 = vadd.f32 %v1378, %v1379
    %v1381 = vsel %vm1321, %v1316, 0.0
    %v1382 = vadd.f32 %v1380, %v1381
    %v1383 = vsel %vm1321, %v1318, 0.0
    %v1384 = vadd.f32 %v1382, %v1383
    %v1385 = vsel %vm1321, %v1320, 0.0
    %v1386 = vadd.f32 %v1384, %v1385
    %1387 = vadd.xlane.f32.xlu0 %v1386
    %v1388 = vpop.xlane.xlu0 %1387
    %v1389 = vrot.slane %v1388, 4
    %v1390 = vadd.f32 %v1388, %v1389
    %v1391 = vrot.slane %v1390, 2
    %v1392 = vadd.f32 %v1390, %v1391
    %v1393 = vrot.slane %v1392, 1
    %v1394 = vadd.f32 %v1392, %v1393
    %s1395 = vtos %v1394
    %s1396 = scvt.f32.s32.to.zero.pseudo %s1395
  $region10: #{connected_components.1} parent=0 // loop_footer
    _
  $region11: #{connected_components.1} parent=0 // loop_footer_branch
    %140 = sbr.rel target = $region7
  $region12: #{connected_components.1} parent=0 // loop_exit
    _
  %1397 = vst [vmem:[%s1] sm:$0xff] %v141
  %1398 = vst [vmem:[%s1 + $0x8] sm:$0xff] %v142
  // Predicated region
  $region13: #{connected_components.1} parent=0 // pred_check
    _
  $region14: #{connected_components.1} parent=0 // pred_check_branch
    %1400 = sbr.rel (0) target = $region16
  $region15: #{connected_components.1} parent=0 // pred_region
    _
  $region16: #{connected_components.1} parent=0 // pred_fallthru
    _
  // Predicated region
  $region17: #{connected_components.1} parent=0 // pred_check
    _
  $region18: #{connected_components.1} parent=0 // pred_check_branch
    %1402 = sbr.rel (0) target = $region20
  $region19: #{connected_components.1} parent=0 // pred_region
    _
  $region20: #{connected_components.1} parent=0 // pred_fallthru
    _

</llo_original>
